<compile_context>
chip_gen: v7x
topology: tpu7x:2x2x1
jax: 0.10.0
libtpu: 0.0.40
codegen_flags: <defaults>
</compile_context>

<pallas_src>
import jax
import jax.numpy as jnp
from jax.experimental import pallas as pl
from jax.experimental.pallas import tpu as pltpu

EPS = 1e-6


# --------------------------------------------------------------------------
# Pallas kernel: fused SKFF weighted sum + LayerNorm + Q projections + stereo
# cross attention + band-fused value projections + residual update, for R
# image rows (R*W pixels) per grid step.
# --------------------------------------------------------------------------
def _hfcim_kernel(xl_ref, xr_ref, attw_ref, cvec_ref, c3vec_ref,
                  wql_ref, wqr_ref, wvl_ref, wvr_ref, o_l_ref, o_r_ref):
    R, W, C3 = xl_ref.shape
    C = C3 // 3
    bf16 = jnp.bfloat16

    # packed (6, C) per-channel vectors: [norm_l_w, norm_l_b, norm_r_w,
    #                                     norm_r_b, bl1*scale, br1]
    nlw = cvec_ref[0:1, :]
    nlb = cvec_ref[1:2, :]
    nrw = cvec_ref[2:3, :]
    nrb = cvec_ref[3:4, :]
    bql = cvec_ref[4:5, :]
    bqr = cvec_ref[5:6, :]
    # packed (4, 3C) vectors: [tile(bl2,3), tile(br2,3), tile(beta,3), tile(gamma,3)]
    bvl = c3vec_ref[0:1, :]
    bvr = c3vec_ref[1:2, :]
    beta3 = c3vec_ref[2:3, :]
    gamma3 = c3vec_ref[3:4, :]

    xl_cat = xl_ref[...]                                    # (R, W, 3C) f32
    xr_cat = xr_ref[...]

    # --- fused SKFF: per-row attention weights * bands, summed over bands
    aw_l = attw_ref[:, 0:1, :]                              # (R, 1, 3C)
    aw_r = attw_ref[:, 1:2, :]
    tl = xl_cat * aw_l
    tr = xr_cat * aw_r
    x_l = tl[:, :, 0:C] + tl[:, :, C:2 * C] + tl[:, :, 2 * C:C3]   # (R, W, C)
    x_r = tr[:, :, 0:C] + tr[:, :, C:2 * C] + tr[:, :, 2 * C:C3]

    def ln(x, w, b):            # per-pixel channel LayerNorm, f32
        mu = jnp.mean(x, axis=-1, keepdims=True)
        var = jnp.mean((x - mu) ** 2, axis=-1, keepdims=True)
        return (x - mu) * jax.lax.rsqrt(var + EPS) * w + b

    # --- Q projections: (R*W, C) @ (C, C), bf16 operands, f32 accumulation.
    #     `scale` is folded into wql / bql on the host.
    ql_in = ln(x_l, nlw, nlb).astype(bf16).reshape(R * W, C)
    qr_in = ln(x_r, nrw, nrb).astype(bf16).reshape(R * W, C)
    q_l = (jnp.dot(ql_in, wql_ref[...],
                   preferred_element_type=jnp.float32) + bql).reshape(R, W, C)
    q_r = (jnp.dot(qr_in, wqr_ref[...],
                   preferred_element_type=jnp.float32) + bqr).reshape(R, W, C)

    # --- stereo cross attention scores per image row: (R, W, W)
    s = jnp.einsum('rwc,rvc->rwv', q_l.astype(bf16), q_r.astype(bf16),
                   preferred_element_type=jnp.float32)

    # softmax(attn, -1)   (left -> right)
    e_l = jnp.exp(s - jnp.max(s, axis=-1, keepdims=True))
    p_l = e_l * pl.reciprocal(jnp.sum(e_l, axis=-1, keepdims=True), approx=True)
    # softmax(attn^T, -1) expressed as normalization over axis=-2 of s
    # (the transpose is folded into the contraction dims of the apply einsum)
    e_r = jnp.exp(s - jnp.max(s, axis=-2, keepdims=True))
    p_r = e_r * pl.reciprocal(jnp.sum(e_r, axis=-2, keepdims=True), approx=True)

    # --- band-fused value projections: one (R*W, 3C) @ (3C, 3C) per view
    v_l = (jnp.dot(xl_cat.astype(bf16).reshape(R * W, C3), wvl_ref[...],
                   preferred_element_type=jnp.float32) + bvl).reshape(R, W, C3)
    v_r = (jnp.dot(xr_cat.astype(bf16).reshape(R * W, C3), wvr_ref[...],
                   preferred_element_type=jnp.float32) + bvr).reshape(R, W, C3)

    # --- attention-weighted cross terms + residual, all three bands at once
    add_l = jnp.einsum('rwv,rvc->rwc', p_l.astype(bf16), v_r.astype(bf16),
                       preferred_element_type=jnp.float32)
    add_r = jnp.einsum('rwv,rwc->rvc', p_r.astype(bf16), v_l.astype(bf16),
                       preferred_element_type=jnp.float32)

    o_l_ref[...] = xl_cat + add_l * beta3
    o_r_ref[...] = xr_cat + add_r * gamma3


def _choose_blocking(nh, w, target_pixels=512, min_steps=4):
    """Rows/step R with R*W ~<= target_pixels, >= min_steps grid steps when
    possible; NH is padded to a multiple of R (handles prime/odd NH)."""
    rows = max(1, target_pixels // max(w, 1))
    if nh >= min_steps:
        rows = min(rows, max(1, nh // min_steps))
    rows = max(1, min(rows, nh))
    nh_pad = ((nh + rows - 1) // rows) * rows
    return rows, nh_pad


def hfcim_attention_pallas(xl_hl, xl_lh, xl_hh, xr_hl, xr_lh, xr_hh,
                           att_l, att_r, p):
    """Band maps NCHW f32; att_l/att_r are the (N, 3, C) SKFF softmax weights."""
    N, C, H, W = xl_hl.shape
    NH = N * H
    C3 = 3 * C
    scale = float(C) ** (-0.5)

    def to_rows(*bands):        # 3x NCHW -> (NH, W, 3C), bands packed on channels
        x = jnp.concatenate(bands, axis=1)                    # (N, 3C, H, W)
        return jnp.transpose(x, (0, 2, 3, 1)).reshape(NH, W, C3)

    xl_cat = to_rows(xl_hl, xl_lh, xl_hh)
    xr_cat = to_rows(xr_hl, xr_lh, xr_hh)

    def att_rows(att):          # (N, 3, C) -> (NH, 3C), broadcast over H
        a = att.reshape(N, 1, C3)
        return jnp.broadcast_to(a, (N, H, C3)).reshape(NH, C3)

    attw = jnp.stack([att_rows(att_l), att_rows(att_r)], axis=1)   # (NH, 2, 3C)

    # host-side weight prep: pre-transpose 1x1 weights, fold `scale` into the
    # left Q projection, block-diagonalise l_proj2/r_proj2 over the 3 bands,
    # cast MXU weights to bf16.
    wql = (jnp.transpose(p["wl1"]) * scale).astype(jnp.bfloat16)   # (C, C)
    wqr = jnp.transpose(p["wr1"]).astype(jnp.bfloat16)
    eye3 = jnp.eye(3, dtype=jnp.float32)
    wvl = jnp.kron(eye3, jnp.transpose(p["wl2"])).astype(jnp.bfloat16)  # (3C, 3C)
    wvr = jnp.kron(eye3, jnp.transpose(p["wr2"])).astype(jnp.bfloat16)

    cvec = jnp.stack([p["norm_l_w"], p["norm_l_b"],
                      p["norm_r_w"], p["norm_r_b"],
                      p["bl1"] * scale, p["br1"]], axis=0)          # (6, C)
    c3vec = jnp.stack([jnp.tile(p["bl2"], 3), jnp.tile(p["br2"], 3),
                       jnp.tile(p["beta"], 3), jnp.tile(p["gamma"], 3)],
                      axis=0)                                       # (4, 3C)

    R, NH_pad = _choose_blocking(NH, W)
    if NH_pad != NH:
        pad = NH_pad - NH
        xl_cat = jnp.pad(xl_cat, ((0, pad), (0, 0), (0, 0)))
        xr_cat = jnp.pad(xr_cat, ((0, pad), (0, 0), (0, 0)))
        attw = jnp.pad(attw, ((0, pad), (0, 0), (0, 0)))
    grid = (NH_pad // R,)

    row_spec = pl.BlockSpec((R, W, C3), lambda i: (i, 0, 0))
    attw_spec = pl.BlockSpec((R, 2, C3), lambda i: (i, 0, 0))

    def full_spec(shape):
        return pl.BlockSpec(shape, lambda i, _n=len(shape): (0,) * _n)

    in_specs = [row_spec, row_spec, attw_spec,
                full_spec((6, C)), full_spec((4, C3)),
                full_spec((C, C)), full_spec((C, C)),
                full_spec((C3, C3)), full_spec((C3, C3))]
    out_specs = [row_spec, row_spec]
    out_shape = [jax.ShapeDtypeStruct((NH_pad, W, C3), jnp.float32)] * 2

    o_l, o_r = pl.pallas_call(
        _hfcim_kernel,
        grid=grid,
        in_specs=in_specs,
        out_specs=out_specs,
        out_shape=out_shape,
        input_output_aliases={0: 0, 1: 1},     # xl_cat -> o_l, xr_cat -> o_r
        compiler_params=pltpu.CompilerParams(
            dimension_semantics=("parallel",),
            vmem_limit_bytes=32 * 1024 * 1024),
    )(xl_cat, xr_cat, attw, cvec, c3vec, wql, wqr, wvl, wvr)

    def from_rows3(x):          # (NH_pad, W, 3C) -> three NCHW tensors
        x = x[:NH].reshape(N, H, W, C3)
        x = jnp.transpose(x, (0, 3, 1, 2))                   # (N, 3C, H, W)
        return x[:, :C], x[:, C:2 * C], x[:, 2 * C:]

    ol_hl, ol_lh, ol_hh = from_rows3(o_l)
    or_hl, or_lh, or_hh = from_rows3(o_r)
    return ol_hl, ol_lh, ol_hh, or_hl, or_lh, or_hh


# --------------------------------------------------------------------------
# SKFF attention weights (canonical MIRNet SKFF head, bias=False) — plain JAX;
# the weighted sum itself is fused into the Pallas kernel.
# --------------------------------------------------------------------------
def skff_attention_weights(b0, b1, b2, w_du, w_fcs):
    u = b0 + b1 + b2
    s = jnp.mean(u, axis=(2, 3))                              # (N, C)
    z = jax.nn.leaky_relu(s @ w_du.T, negative_slope=0.2)     # (N, d)
    att = jnp.stack([z @ w.T for w in w_fcs], axis=1)         # (N, 3, C)
    return jax.nn.softmax(att, axis=1)


@jax.jit
def hfcim_forward(xl_hl, xl_lh, xl_hh, xr_hl, xr_lh, xr_hh, params):
    att_l = skff_attention_weights(xl_hl, xl_lh, xl_hh,
                                   params["skff_w_du"], params["skff_w_fcs"])
    att_r = skff_attention_weights(xr_hl, xr_lh, xr_hh,
                                   params["skff_w_du"], params["skff_w_fcs"])
    return hfcim_attention_pallas(xl_hl, xl_lh, xl_hh, xr_hl, xr_lh, xr_hh,
                                  att_l, att_r, params)


# --------------------------------------------------------------------------
# Pure-JAX reference (mirrors the PyTorch forward) for validation
# --------------------------------------------------------------------------
def skff_reference(feat_list, w_du, w_fcs):
    att = skff_attention_weights(feat_list[0], feat_list[1], feat_list[2],
                                 w_du, w_fcs)
    inp = jnp.stack(feat_list, axis=1)                        # (N, 3, C, H, W)
    return jnp.sum(inp * att[:, :, :, None, None], axis=1)


def hfcim_reference(xl_hl, xl_lh, xl_hh, xr_hl, xr_lh, xr_hh, p):
    C = xl_hl.shape[1]
    scale = float(C) ** (-0.5)

    def ln2d(x, w, b):
        mu = jnp.mean(x, axis=1, keepdims=True)
        var = jnp.mean((x - mu) ** 2, axis=1, keepdims=True)
        y = (x - mu) / jnp.sqrt(var + EPS)
        return w[None, :, None, None] * y + b[None, :, None, None]

    def conv1x1(x, w, b):
        return jnp.einsum('nchw,oc->nohw', x, w) + b[None, :, None, None]

    x_l = skff_reference([xl_hl, xl_lh, xl_hh], p["skff_w_du"], p["skff_w_fcs"])
    x_r = skff_reference([xr_hl, xr_lh, xr_hh], p["skff_w_du"], p["skff_w_fcs"])

    q_l = jnp.transpose(conv1x1(ln2d(x_l, p["norm_l_w"], p["norm_l_b"]),
                                p["wl1"], p["bl1"]), (0, 2, 3, 1))    # N,H,W,C
    q_r_t = jnp.transpose(conv1x1(ln2d(x_r, p["norm_r_w"], p["norm_r_b"]),
                                  p["wr1"], p["br1"]), (0, 2, 1, 3))  # N,H,C,W

    def v_l(x):  # l_proj2, to NHWC
        return jnp.transpose(conv1x1(x, p["wl2"], p["bl2"]), (0, 2, 3, 1))

    def v_r(x):  # r_proj2, to NHWC
        return jnp.transpose(conv1x1(x, p["wr2"], p["br2"]), (0, 2, 3, 1))

    attn = jnp.einsum('nhwc,nhcv->nhwv', q_l, q_r_t) * scale          # N,H,Wl,Wr
    a_l = jax.nn.softmax(attn, axis=-1)
    a_r = jax.nn.softmax(jnp.transpose(attn, (0, 1, 3, 2)), axis=-1)

    beta = p["beta"][None, :, None, None]
    gamma = p["gamma"][None, :, None, None]

    def nhwc_to_nchw(x):
        return jnp.transpose(x, (0, 3, 1, 2))

    def fuse(xl, xr):
        add_l = nhwc_to_nchw(jnp.einsum('nhwv,nhvc->nhwc', a_l, v_r(xr))) * beta
        add_r = nhwc_to_nchw(jnp.einsum('nhvw,nhwc->nhvc', a_r, v_l(xl))) * gamma
        return xl + add_l, xr + add_r

    ol_hl, or_hl = fuse(xl_hl, xr_hl)
    ol_lh, or_lh = fuse(xl_lh, xr_lh)
    ol_hh, or_hh = fuse(xl_hh, xr_hh)
    return ol_hl, ol_lh, ol_hh, or_hl, or_lh, or_hh


# --------------------------------------------------------------------------
def make_params(key, c):
    d = max(c // 8, 4)
    ks = jax.random.split(key, 16)
    n = lambda k, shape, s=0.1: s * jax.random.normal(k, shape, dtype=jnp.float32)
    return {
        # LayerNorm2d affine params (perturbed from ones/zeros for a non-trivial test)
        "norm_l_w": 1.0 + n(ks[0], (c,)), "norm_l_b": n(ks[1], (c,)),
        "norm_r_w": 1.0 + n(ks[2], (c,)), "norm_r_b": n(ks[3], (c,)),
        # 1x1 conv weights (Cout, Cin) and biases
        "wl1": n(ks[4], (c, c)), "bl1": n(ks[5], (c,)),
        "wr1": n(ks[6], (c, c)), "br1": n(ks[7], (c,)),
        "wl2": n(ks[8], (c, c)), "bl2": n(ks[9], (c,)),
        "wr2": n(ks[10], (c, c)), "br2": n(ks[11], (c,)),
        # beta / gamma (perturbed from zeros so the cross path is exercised)
        "beta": n(ks[12], (c,)), "gamma": n(ks[13], (c,)),
        # SKFF params (canonical MIRNet SKFF, bias=False)
        "skff_w_du": n(ks[14], (d, c)),
        "skff_w_fcs": [n(k, (c, d)) for k in jax.random.split(ks[15], 3)],
    }


if __name__ == "__main__":
    N, C, H, W = 2, 32, 8, 16
    key = jax.random.PRNGKey(0)
    kx, kp = jax.random.split(key)
    xs = jax.random.normal(kx, (6, N, C, H, W), dtype=jnp.float32)
    xl_hl, xl_lh, xl_hh, xr_hl, xr_lh, xr_hh = [xs[i] for i in range(6)]

    params = make_params(kp, C)

    outs = hfcim_forward(xl_hl, xl_lh, xl_hh, xr_hl, xr_lh, xr_hh, params)
    outs = jax.block_until_ready(outs)

    refs = hfcim_reference(xl_hl, xl_lh, xl_hh, xr_hl, xr_lh, xr_hh, params)
    # tolerance loosened for bf16 MXU operands + approx reciprocal in softmax
    for o, r in zip(outs, refs):
        assert o.shape == (N, C, H, W)
        err = float(jnp.max(jnp.abs(o - r)))
        assert jnp.allclose(o, r, rtol=2e-2, atol=2e-2), err

    print("KERNEL_OK")
</pallas_src>

<mosaic_0001>
module attributes {stable_mosaic.version = 11 : i64} {
  func.func @_hfcim_kernel(%arg0: i32, %arg1: memref<4x16x96xf32, #tpu.memory_space<vmem>>, %arg2: memref<4x16x96xf32, #tpu.memory_space<vmem>>, %arg3: memref<4x2x96xf32, #tpu.memory_space<vmem>>, %arg4: memref<6x32xf32, #tpu.memory_space<vmem>>, %arg5: memref<4x96xf32, #tpu.memory_space<vmem>>, %arg6: memref<32x32xbf16, #tpu.memory_space<vmem>>, %arg7: memref<32x32xbf16, #tpu.memory_space<vmem>>, %arg8: memref<96x96xbf16, #tpu.memory_space<vmem>>, %arg9: memref<96x96xbf16, #tpu.memory_space<vmem>>, %arg10: memref<4x16x96xf32, #tpu.memory_space<vmem>>, %arg11: memref<4x16x96xf32, #tpu.memory_space<vmem>>) attributes {dimension_semantics = [#tpu.dimension_semantics<parallel>], iteration_bounds = array<i64: 4>, scalar_prefetch = 0 : i64, scratch_operands = 0 : i64, tpu.core_type = #tpu.core_type<tc>, window_params = [{transform_indices = @transform_0, window_bounds = array<i64: 4, 16, 96>}, {transform_indices = @transform_1, window_bounds = array<i64: 4, 16, 96>}, {transform_indices = @transform_2, window_bounds = array<i64: 4, 2, 96>}, {pipeline_mode = #tpu.pipeline_mode<synchronous>, transform_indices = @transform_3, window_bounds = array<i64: 6, 32>}, {pipeline_mode = #tpu.pipeline_mode<synchronous>, transform_indices = @transform_4, window_bounds = array<i64: 4, 96>}, {pipeline_mode = #tpu.pipeline_mode<synchronous>, transform_indices = @transform_5, window_bounds = array<i64: 32, 32>}, {pipeline_mode = #tpu.pipeline_mode<synchronous>, transform_indices = @transform_6, window_bounds = array<i64: 32, 32>}, {pipeline_mode = #tpu.pipeline_mode<synchronous>, transform_indices = @transform_7, window_bounds = array<i64: 96, 96>}, {pipeline_mode = #tpu.pipeline_mode<synchronous>, transform_indices = @transform_8, window_bounds = array<i64: 96, 96>}, {transform_indices = @transform_9, window_bounds = array<i64: 4, 16, 96>}, {transform_indices = @transform_10, window_bounds = array<i64: 4, 16, 96>}]} {
    %c0 = arith.constant 0 : index
    %c0_0 = arith.constant 0 : index
    %0 = vector.load %arg4[%c0, %c0_0] : memref<6x32xf32, #tpu.memory_space<vmem>>, vector<1x32xf32>
    %c1 = arith.constant 1 : index
    %c0_1 = arith.constant 0 : index
    %1 = vector.load %arg4[%c1, %c0_1] : memref<6x32xf32, #tpu.memory_space<vmem>>, vector<1x32xf32>
    %c2 = arith.constant 2 : index
    %c0_2 = arith.constant 0 : index
    %2 = vector.load %arg4[%c2, %c0_2] : memref<6x32xf32, #tpu.memory_space<vmem>>, vector<1x32xf32>
    %c3 = arith.constant 3 : index
    %c0_3 = arith.constant 0 : index
    %3 = vector.load %arg4[%c3, %c0_3] : memref<6x32xf32, #tpu.memory_space<vmem>>, vector<1x32xf32>
    %c4 = arith.constant 4 : index
    %c0_4 = arith.constant 0 : index
    %4 = vector.load %arg4[%c4, %c0_4] : memref<6x32xf32, #tpu.memory_space<vmem>>, vector<1x32xf32>
    %c5 = arith.constant 5 : index
    %c0_5 = arith.constant 0 : index
    %5 = vector.load %arg4[%c5, %c0_5] : memref<6x32xf32, #tpu.memory_space<vmem>>, vector<1x32xf32>
    %c0_6 = arith.constant 0 : index
    %c0_7 = arith.constant 0 : index
    %6 = vector.load %arg5[%c0_6, %c0_7] : memref<4x96xf32, #tpu.memory_space<vmem>>, vector<1x96xf32>
    %c1_8 = arith.constant 1 : index
    %c0_9 = arith.constant 0 : index
    %7 = vector.load %arg5[%c1_8, %c0_9] : memref<4x96xf32, #tpu.memory_space<vmem>>, vector<1x96xf32>
    %c2_10 = arith.constant 2 : index
    %c0_11 = arith.constant 0 : index
    %8 = vector.load %arg5[%c2_10, %c0_11] : memref<4x96xf32, #tpu.memory_space<vmem>>, vector<1x96xf32>
    %c3_12 = arith.constant 3 : index
    %c0_13 = arith.constant 0 : index
    %9 = vector.load %arg5[%c3_12, %c0_13] : memref<4x96xf32, #tpu.memory_space<vmem>>, vector<1x96xf32>
    %c0_14 = arith.constant 0 : index
    %c0_15 = arith.constant 0 : index
    %c0_16 = arith.constant 0 : index
    %10 = vector.load %arg1[%c0_14, %c0_15, %c0_16] : memref<4x16x96xf32, #tpu.memory_space<vmem>>, vector<4x16x96xf32>
    %c0_17 = arith.constant 0 : index
    %c0_18 = arith.constant 0 : index
    %c0_19 = arith.constant 0 : index
    %11 = vector.load %arg2[%c0_17, %c0_18, %c0_19] : memref<4x16x96xf32, #tpu.memory_space<vmem>>, vector<4x16x96xf32>
    %c0_20 = arith.constant 0 : index
    %c0_21 = arith.constant 0 : index
    %c0_22 = arith.constant 0 : index
    %12 = vector.load %arg3[%c0_20, %c0_21, %c0_22] : memref<4x2x96xf32, #tpu.memory_space<vmem>>, vector<4x1x96xf32>
    %c0_23 = arith.constant 0 : index
    %c1_24 = arith.constant 1 : index
    %c0_25 = arith.constant 0 : index
    %13 = vector.load %arg3[%c0_23, %c1_24, %c0_25] : memref<4x2x96xf32, #tpu.memory_space<vmem>>, vector<4x1x96xf32>
    %14 = vector.broadcast %12 : vector<4x1x96xf32> to vector<4x16x96xf32>
    %15 = arith.mulf %10, %14 : vector<4x16x96xf32>
    %16 = vector.broadcast %13 : vector<4x1x96xf32> to vector<4x16x96xf32>
    %17 = arith.mulf %11, %16 : vector<4x16x96xf32>
    %18 = vector.extract_strided_slice %15 {offsets = [0, 0, 0], sizes = [4, 16, 32], strides = [1, 1, 1]} : vector<4x16x96xf32> to vector<4x16x32xf32>
    %19 = vector.extract_strided_slice %15 {offsets = [0, 0, 32], sizes = [4, 16, 32], strides = [1, 1, 1]} : vector<4x16x96xf32> to vector<4x16x32xf32>
    %20 = arith.addf %18, %19 : vector<4x16x32xf32>
    %21 = vector.extract_strided_slice %15 {offsets = [0, 0, 64], sizes = [4, 16, 32], strides = [1, 1, 1]} : vector<4x16x96xf32> to vector<4x16x32xf32>
    %22 = arith.addf %20, %21 : vector<4x16x32xf32>
    %23 = vector.extract_strided_slice %17 {offsets = [0, 0, 0], sizes = [4, 16, 32], strides = [1, 1, 1]} : vector<4x16x96xf32> to vector<4x16x32xf32>
    %24 = vector.extract_strided_slice %17 {offsets = [0, 0, 32], sizes = [4, 16, 32], strides = [1, 1, 1]} : vector<4x16x96xf32> to vector<4x16x32xf32>
    %25 = arith.addf %23, %24 : vector<4x16x32xf32>
    %26 = vector.extract_strided_slice %17 {offsets = [0, 0, 64], sizes = [4, 16, 32], strides = [1, 1, 1]} : vector<4x16x96xf32> to vector<4x16x32xf32>
    %27 = arith.addf %25, %26 : vector<4x16x32xf32>
    %cst = arith.constant dense<0.000000e+00> : vector<4x16xf32>
    %28 = vector.multi_reduction <add>, %22, %cst [2] : vector<4x16x32xf32> to vector<4x16xf32>
    %29 = vector.shape_cast %28 : vector<4x16xf32> to vector<4x16x1xf32>
    %cst_26 = arith.constant 3.200000e+01 : f32
    %30 = vector.broadcast %cst_26 : f32 to vector<4x16x1xf32>
    %31 = arith.divf %29, %30 : vector<4x16x1xf32>
    %32 = vector.broadcast %31 : vector<4x16x1xf32> to vector<4x16x32xf32>
    %33 = arith.subf %22, %32 : vector<4x16x32xf32>
    %34 = arith.mulf %33, %33 : vector<4x16x32xf32>
    %cst_27 = arith.constant dense<0.000000e+00> : vector<4x16xf32>
    %35 = vector.multi_reduction <add>, %34, %cst_27 [2] : vector<4x16x32xf32> to vector<4x16xf32>
    %36 = vector.shape_cast %35 : vector<4x16xf32> to vector<4x16x1xf32>
    %cst_28 = arith.constant 3.200000e+01 : f32
    %37 = vector.broadcast %cst_28 : f32 to vector<4x16x1xf32>
    %38 = arith.divf %36, %37 : vector<4x16x1xf32>
    %39 = vector.broadcast %31 : vector<4x16x1xf32> to vector<4x16x32xf32>
    %40 = arith.subf %22, %39 : vector<4x16x32xf32>
    %cst_29 = arith.constant 9.99999997E-7 : f32
    %41 = vector.broadcast %cst_29 : f32 to vector<4x16x1xf32>
    %42 = arith.addf %38, %41 : vector<4x16x1xf32>
    %43 = math.rsqrt %42 : vector<4x16x1xf32>
    %44 = vector.broadcast %43 : vector<4x16x1xf32> to vector<4x16x32xf32>
    %45 = arith.mulf %40, %44 : vector<4x16x32xf32>
    %46 = vector.shape_cast %0 : vector<1x32xf32> to vector<1x1x32xf32>
    %47 = vector.broadcast %46 : vector<1x1x32xf32> to vector<4x16x32xf32>
    %48 = arith.mulf %45, %47 : vector<4x16x32xf32>
    %49 = vector.shape_cast %1 : vector<1x32xf32> to vector<1x1x32xf32>
    %50 = vector.broadcast %49 : vector<1x1x32xf32> to vector<4x16x32xf32>
    %51 = arith.addf %48, %50 : vector<4x16x32xf32>
    %52 = arith.truncf %51 : vector<4x16x32xf32> to vector<4x16x32xbf16>
    %53 = vector.shape_cast %52 : vector<4x16x32xbf16> to vector<64x32xbf16>
    %cst_30 = arith.constant dense<0.000000e+00> : vector<4x16xf32>
    %54 = vector.multi_reduction <add>, %27, %cst_30 [2] : vector<4x16x32xf32> to vector<4x16xf32>
    %55 = vector.shape_cast %54 : vector<4x16xf32> to vector<4x16x1xf32>
    %cst_31 = arith.constant 3.200000e+01 : f32
    %56 = vector.broadcast %cst_31 : f32 to vector<4x16x1xf32>
    %57 = arith.divf %55, %56 : vector<4x16x1xf32>
    %58 = vector.broadcast %57 : vector<4x16x1xf32> to vector<4x16x32xf32>
    %59 = arith.subf %27, %58 : vector<4x16x32xf32>
    %60 = arith.mulf %59, %59 : vector<4x16x32xf32>
    %cst_32 = arith.constant dense<0.000000e+00> : vector<4x16xf32>
    %61 = vector.multi_reduction <add>, %60, %cst_32 [2] : vector<4x16x32xf32> to vector<4x16xf32>
    %62 = vector.shape_cast %61 : vector<4x16xf32> to vector<4x16x1xf32>
    %cst_33 = arith.constant 3.200000e+01 : f32
    %63 = vector.broadcast %cst_33 : f32 to vector<4x16x1xf32>
    %64 = arith.divf %62, %63 : vector<4x16x1xf32>
    %65 = vector.broadcast %57 : vector<4x16x1xf32> to vector<4x16x32xf32>
    %66 = arith.subf %27, %65 : vector<4x16x32xf32>
    %cst_34 = arith.constant 9.99999997E-7 : f32
    %67 = vector.broadcast %cst_34 : f32 to vector<4x16x1xf32>
    %68 = arith.addf %64, %67 : vector<4x16x1xf32>
    %69 = math.rsqrt %68 : vector<4x16x1xf32>
    %70 = vector.broadcast %69 : vector<4x16x1xf32> to vector<4x16x32xf32>
    %71 = arith.mulf %66, %70 : vector<4x16x32xf32>
    %72 = vector.shape_cast %2 : vector<1x32xf32> to vector<1x1x32xf32>
    %73 = vector.broadcast %72 : vector<1x1x32xf32> to vector<4x16x32xf32>
    %74 = arith.mulf %71, %73 : vector<4x16x32xf32>
    %75 = vector.shape_cast %3 : vector<1x32xf32> to vector<1x1x32xf32>
    %76 = vector.broadcast %75 : vector<1x1x32xf32> to vector<4x16x32xf32>
    %77 = arith.addf %74, %76 : vector<4x16x32xf32>
    %78 = arith.truncf %77 : vector<4x16x32xf32> to vector<4x16x32xbf16>
    %79 = vector.shape_cast %78 : vector<4x16x32xbf16> to vector<64x32xbf16>
    %c0_35 = arith.constant 0 : index
    %c0_36 = arith.constant 0 : index
    %80 = vector.load %arg6[%c0_35, %c0_36] : memref<32x32xbf16, #tpu.memory_space<vmem>>, vector<32x32xbf16>
    %cst_37 = arith.constant dense<0.000000e+00> : vector<64x32xf32>
    %81 = tpu.matmul %53, %80, %cst_37 {dimension_numbers = #tpu.dot_dimension_numbers<[1], [0], [0], [1], [0, 0, 1, 1], [], []>} : vector<64x32xbf16>, vector<32x32xbf16>, vector<64x32xf32> -> vector<64x32xf32>
    %82 = vector.broadcast %4 : vector<1x32xf32> to vector<64x32xf32>
    %83 = arith.addf %81, %82 : vector<64x32xf32>
    %84 = vector.shape_cast %83 : vector<64x32xf32> to vector<4x16x32xf32>
    %c0_38 = arith.constant 0 : index
    %c0_39 = arith.constant 0 : index
    %85 = vector.load %arg7[%c0_38, %c0_39] : memref<32x32xbf16, #tpu.memory_space<vmem>>, vector<32x32xbf16>
    %cst_40 = arith.constant dense<0.000000e+00> : vector<64x32xf32>
    %86 = tpu.matmul %79, %85, %cst_40 {dimension_numbers = #tpu.dot_dimension_numbers<[1], [0], [0], [1], [0, 0, 1, 1], [], []>} : vector<64x32xbf16>, vector<32x32xbf16>, vector<64x32xf32> -> vector<64x32xf32>
    %87 = vector.broadcast %5 : vector<1x32xf32> to vector<64x32xf32>
    %88 = arith.addf %86, %87 : vector<64x32xf32>
    %89 = vector.shape_cast %88 : vector<64x32xf32> to vector<4x16x32xf32>
    %90 = arith.truncf %84 : vector<4x16x32xf32> to vector<4x16x32xbf16>
    %91 = arith.truncf %89 : vector<4x16x32xf32> to vector<4x16x32xbf16>
    "tpu.trace_start"() <{level = 10 : i32, message = "rwc,rvc->rwv"}> : () -> ()
    %cst_41 = arith.constant dense<0.000000e+00> : vector<4x16x16xf32>
    %92 = tpu.matmul %90, %91, %cst_41 {dimension_numbers = #tpu.dot_dimension_numbers<[2], [2], [1], [1], [0, 0, 0, 1, 1, 1], [0], [0]>} : vector<4x16x32xbf16>, vector<4x16x32xbf16>, vector<4x16x16xf32> -> vector<4x16x16xf32>
    "tpu.trace_stop"() : () -> ()
    %cst_42 = arith.constant dense<0xFF800000> : vector<4x16xf32>
    %93 = vector.multi_reduction <maximumf>, %92, %cst_42 [2] : vector<4x16x16xf32> to vector<4x16xf32>
    %94 = vector.shape_cast %93 : vector<4x16xf32> to vector<4x16x1xf32>
    %95 = vector.broadcast %94 : vector<4x16x1xf32> to vector<4x16x16xf32>
    %96 = arith.subf %92, %95 : vector<4x16x16xf32>
    %97 = math.exp %96 : vector<4x16x16xf32>
    %cst_43 = arith.constant dense<0.000000e+00> : vector<4x16xf32>
    %98 = vector.multi_reduction <add>, %97, %cst_43 [2] : vector<4x16x16xf32> to vector<4x16xf32>
    %99 = vector.shape_cast %98 : vector<4x16xf32> to vector<4x16x1xf32>
    %100 = tpu.reciprocal %99 {approx = true} : vector<4x16x1xf32> -> vector<4x16x1xf32>
    %101 = vector.broadcast %100 : vector<4x16x1xf32> to vector<4x16x16xf32>
    %102 = arith.mulf %97, %101 : vector<4x16x16xf32>
    %cst_44 = arith.constant dense<0xFF800000> : vector<4x16xf32>
    %103 = vector.multi_reduction <maximumf>, %92, %cst_44 [1] : vector<4x16x16xf32> to vector<4x16xf32>
    %104 = vector.shape_cast %103 : vector<4x16xf32> to vector<4x1x16xf32>
    %105 = vector.broadcast %104 : vector<4x1x16xf32> to vector<4x16x16xf32>
    %106 = arith.subf %92, %105 : vector<4x16x16xf32>
    %107 = math.exp %106 : vector<4x16x16xf32>
    %cst_45 = arith.constant dense<0.000000e+00> : vector<4x16xf32>
    %108 = vector.multi_reduction <add>, %107, %cst_45 [1] : vector<4x16x16xf32> to vector<4x16xf32>
    %109 = vector.shape_cast %108 : vector<4x16xf32> to vector<4x1x16xf32>
    %110 = tpu.reciprocal %109 {approx = true} : vector<4x1x16xf32> -> vector<4x1x16xf32>
    %111 = vector.broadcast %110 : vector<4x1x16xf32> to vector<4x16x16xf32>
    %112 = arith.mulf %107, %111 : vector<4x16x16xf32>
    %113 = arith.truncf %10 : vector<4x16x96xf32> to vector<4x16x96xbf16>
    %114 = vector.shape_cast %113 : vector<4x16x96xbf16> to vector<64x96xbf16>
    %c0_46 = arith.constant 0 : index
    %c0_47 = arith.constant 0 : index
    %115 = vector.load %arg8[%c0_46, %c0_47] : memref<96x96xbf16, #tpu.memory_space<vmem>>, vector<96x96xbf16>
    %cst_48 = arith.constant dense<0.000000e+00> : vector<64x96xf32>
    %116 = tpu.matmul %114, %115, %cst_48 {dimension_numbers = #tpu.dot_dimension_numbers<[1], [0], [0], [1], [0, 0, 1, 1], [], []>} : vector<64x96xbf16>, vector<96x96xbf16>, vector<64x96xf32> -> vector<64x96xf32>
    %117 = vector.broadcast %6 : vector<1x96xf32> to vector<64x96xf32>
    %118 = arith.addf %116, %117 : vector<64x96xf32>
    %119 = vector.shape_cast %118 : vector<64x96xf32> to vector<4x16x96xf32>
    %120 = arith.truncf %11 : vector<4x16x96xf32> to vector<4x16x96xbf16>
    %121 = vector.shape_cast %120 : vector<4x16x96xbf16> to vector<64x96xbf16>
    %c0_49 = arith.constant 0 : index
    %c0_50 = arith.constant 0 : index
    %122 = vector.load %arg9[%c0_49, %c0_50] : memref<96x96xbf16, #tpu.memory_space<vmem>>, vector<96x96xbf16>
    %cst_51 = arith.constant dense<0.000000e+00> : vector<64x96xf32>
    %123 = tpu.matmul %121, %122, %cst_51 {dimension_numbers = #tpu.dot_dimension_numbers<[1], [0], [0], [1], [0, 0, 1, 1], [], []>} : vector<64x96xbf16>, vector<96x96xbf16>, vector<64x96xf32> -> vector<64x96xf32>
    %124 = vector.broadcast %7 : vector<1x96xf32> to vector<64x96xf32>
    %125 = arith.addf %123, %124 : vector<64x96xf32>
    %126 = vector.shape_cast %125 : vector<64x96xf32> to vector<4x16x96xf32>
    %127 = arith.truncf %102 : vector<4x16x16xf32> to vector<4x16x16xbf16>
    %128 = arith.truncf %126 : vector<4x16x96xf32> to vector<4x16x96xbf16>
    "tpu.trace_start"() <{level = 10 : i32, message = "rwv,rvc->rwc"}> : () -> ()
    %cst_52 = arith.constant dense<0.000000e+00> : vector<4x16x96xf32>
    %129 = tpu.matmul %127, %128, %cst_52 {dimension_numbers = #tpu.dot_dimension_numbers<[2], [1], [1], [2], [0, 0, 0, 1, 1, 2], [0], [0]>} : vector<4x16x16xbf16>, vector<4x16x96xbf16>, vector<4x16x96xf32> -> vector<4x16x96xf32>
    "tpu.trace_stop"() : () -> ()
    %130 = arith.truncf %112 : vector<4x16x16xf32> to vector<4x16x16xbf16>
    %131 = arith.truncf %119 : vector<4x16x96xf32> to vector<4x16x96xbf16>
    "tpu.trace_start"() <{level = 10 : i32, message = "rwv,rwc->rvc"}> : () -> ()
    %cst_53 = arith.constant dense<0.000000e+00> : vector<4x16x96xf32>
    %132 = tpu.matmul %130, %131, %cst_53 {dimension_numbers = #tpu.dot_dimension_numbers<[1], [1], [2], [2], [0, 0, 0, 2, 1, 2], [0], [0]>} : vector<4x16x16xbf16>, vector<4x16x96xbf16>, vector<4x16x96xf32> -> vector<4x16x96xf32>
    "tpu.trace_stop"() : () -> ()
    %133 = vector.shape_cast %8 : vector<1x96xf32> to vector<1x1x96xf32>
    %134 = vector.broadcast %133 : vector<1x1x96xf32> to vector<4x16x96xf32>
    %135 = arith.mulf %129, %134 : vector<4x16x96xf32>
    %136 = arith.addf %10, %135 : vector<4x16x96xf32>
    %c0_54 = arith.constant 0 : index
    %c0_55 = arith.constant 0 : index
    %c0_56 = arith.constant 0 : index
    %137 = vector.load %arg10[%c0_54, %c0_55, %c0_56] : memref<4x16x96xf32, #tpu.memory_space<vmem>>, vector<4x16x96xf32>
    tpu.vector_store %arg10[%c0_54, %c0_55, %c0_56], %136 {strides = array<i32>} : memref<4x16x96xf32, #tpu.memory_space<vmem>>, vector<4x16x96xf32>,
    %138 = vector.shape_cast %9 : vector<1x96xf32> to vector<1x1x96xf32>
    %139 = vector.broadcast %138 : vector<1x1x96xf32> to vector<4x16x96xf32>
    %140 = arith.mulf %132, %139 : vector<4x16x96xf32>
    %141 = arith.addf %11, %140 : vector<4x16x96xf32>
    %c0_57 = arith.constant 0 : index
    %c0_58 = arith.constant 0 : index
    %c0_59 = arith.constant 0 : index
    %142 = vector.load %arg11[%c0_57, %c0_58, %c0_59] : memref<4x16x96xf32, #tpu.memory_space<vmem>>, vector<4x16x96xf32>
    tpu.vector_store %arg11[%c0_57, %c0_58, %c0_59], %141 {strides = array<i32>} : memref<4x16x96xf32, #tpu.memory_space<vmem>>, vector<4x16x96xf32>,
    return
  }
  func.func @transform_0(%arg0: i32) -> (i32, i32, i32) {
    %c0_i32 = arith.constant 0 : i32
    %c0_i32_0 = arith.constant 0 : i32
    %c0_i32_1 = arith.constant 0 : i32
    return %arg0, %c0_i32, %c0_i32_0 : i32, i32, i32
  }
  func.func @transform_1(%arg0: i32) -> (i32, i32, i32) {
    %c0_i32 = arith.constant 0 : i32
    %c0_i32_0 = arith.constant 0 : i32
    %c0_i32_1 = arith.constant 0 : i32
    return %arg0, %c0_i32, %c0_i32_0 : i32, i32, i32
  }
  func.func @transform_2(%arg0: i32) -> (i32, i32, i32) {
    %c0_i32 = arith.constant 0 : i32
    %c0_i32_0 = arith.constant 0 : i32
    %c0_i32_1 = arith.constant 0 : i32
    return %arg0, %c0_i32, %c0_i32_0 : i32, i32, i32
  }
  func.func @transform_3(%arg0: i32) -> (i32, i32) {
    %c0_i32 = arith.constant 0 : i32
    %c0_i32_0 = arith.constant 0 : i32
    %c0_i32_1 = arith.constant 0 : i32
    return %c0_i32, %c0_i32_0 : i32, i32
  }
  func.func @transform_4(%arg0: i32) -> (i32, i32) {
    %c0_i32 = arith.constant 0 : i32
    %c0_i32_0 = arith.constant 0 : i32
    %c0_i32_1 = arith.constant 0 : i32
    return %c0_i32, %c0_i32_0 : i32, i32
  }
  func.func @transform_5(%arg0: i32) -> (i32, i32) {
    %c0_i32 = arith.constant 0 : i32
    %c0_i32_0 = arith.constant 0 : i32
    %c0_i32_1 = arith.constant 0 : i32
    return %c0_i32, %c0_i32_0 : i32, i32
  }
  func.func @transform_6(%arg0: i32) -> (i32, i32) {
    %c0_i32 = arith.constant 0 : i32
    %c0_i32_0 = arith.constant 0 : i32
    %c0_i32_1 = arith.constant 0 : i32
    return %c0_i32, %c0_i32_0 : i32, i32
  }
  func.func @transform_7(%arg0: i32) -> (i32, i32) {
    %c0_i32 = arith.constant 0 : i32
    %c0_i32_0 = arith.constant 0 : i32
    %c0_i32_1 = arith.constant 0 : i32
    return %c0_i32, %c0_i32_0 : i32, i32
  }
  func.func @transform_8(%arg0: i32) -> (i32, i32) {
    %c0_i32 = arith.constant 0 : i32
    %c0_i32_0 = arith.constant 0 : i32
    %c0_i32_1 = arith.constant 0 : i32
    return %c0_i32, %c0_i32_0 : i32, i32
  }
  func.func @transform_9(%arg0: i32) -> (i32, i32, i32) {
    %c0_i32 = arith.constant 0 : i32
    %c0_i32_0 = arith.constant 0 : i32
    %c0_i32_1 = arith.constant 0 : i32
    return %arg0, %c0_i32, %c0_i32_0 : i32, i32, i32
  }
  func.func @transform_10(%arg0: i32) -> (i32, i32, i32) {
    %c0_i32 = arith.constant 0 : i32
    %c0_i32_0 = arith.constant 0 : i32
    %c0_i32_1 = arith.constant 0 : i32
    return %arg0, %c0_i32, %c0_i32_0 : i32, i32, i32
  }
}

</mosaic_0001>

<llo_original>
// kernel: tile.31
$region0: #{tile.31}
  #allocation0 [shape = 's32[1]{0}', space=sflag, size = 0x4, scoped, tag = 'scoped memory for tile.31']
  %s0 = inlined_call_operand.vmem [shape: f32[32], index: 0, kind: input, shape index: {}]
  %s1 = inlined_call_operand.vmem [shape: f32[3,32], index: 1, kind: output, shape index: {}]
  // Predicated region
  $region2: #{tile.31} parent=0 // pred_check
    _
  $region3: #{tile.31} parent=0 // pred_check_branch
    %3 = sbr.rel (0) target = $region5
  $region4: #{tile.31} parent=0 // pred_region
    _
  $region5: #{tile.31} parent=0 // pred_fallthru
    _
  %v4 = vld [vmem:[%s0] ss:$0 sm:$0xff]
  %5 = vst [vmem:[%s1] sm:$0xf] %v4

// kernel: tile.38
$region0: #{tile.38}
  %s0 = inlined_call_operand.vmem [shape: f32[3,32], index: 0, kind: input, shape index: {}]
  %s1 = inlined_call_operand.vmem [shape: f32[1,96], index: 1, kind: output, shape index: {}]
  $region1: #{tile.38} parent=0
    #allocation0 [shape = 'u8[4096]{0}', space=vmem, size = 0x1000, scoped, tag = 'scoped mem for output reshape']
    #allocation1 [shape = 'u8[4096]{0}', space=vmem, size = 0x1000, scoped, tag = 'scoped mem for input reshape']
    %s3 = sshllo.u32 0, 4
    %v4 = vld [vmem:[%s0] sm:%s3]
    %5 = vst [vmem:[#allocation1] sm:%s3] %v4
    %v6 = vld [vmem:[#allocation1] sm:$0x1]
    %vm7 = vcmask 261120
    %8 = vst.msk [vmem:[#allocation0] sm:$0x1] %vm7, %v6
    %s9 = scalar_lea.vmem [#allocation1], 2
    %v10 = vld [vmem:[%s9] sm:$0x1]
    %11 = vrot.lane.b32.xlu0 %v10, 64
    %v12 = vpop.permute.xlu0 %11
    %vm13 = vcmask 785920
    %14 = vst.msk [vmem:[#allocation0] sm:$0x1] %vm13, %v12
    %s15 = scalar_lea.vmem [#allocation1], 1
    %v16 = vld [vmem:[%s15] sm:$0x1]
    %17 = vrot.lane.b32.xlu0 %v16, 32
    %v18 = vpop.permute.xlu0 %17
    %vm19 = vcmask 523520
    %20 = vst.msk [vmem:[#allocation0] sm:$0x1] %vm19, %v18
    %s22 = sshllo.u32 0, 1
    %v24 = vld [vmem:[#allocation0] sm:%s22]
    %s25 = sshllo.u32 0, 1
    %26 = vst [vmem:[%s1] sm:%s25] %v24

// kernel: hfcim_forward.1
$region0: #{hfcim_forward.1}
  #allocation0 [shape = 'u32[]', space=smem, size = 0x4, offset = 0x4, fixed_abs, tag = 'smem constant byte address 0x4 - core index']
  #allocation1 [shape = 'u32[144,128]{1,0:T(1,128)}', space=vmem, size = 0x12000, scoped, tag = 'internal scratch']
  %s0 = inlined_call_operand.vmem [shape: f32[16,16,96], index: 0, kind: input, shape index: {}, may-alias: {0,9}]
  %s1 = inlined_call_operand.vmem [shape: f32[16,16,96], index: 1, kind: input, shape index: {}, may-alias: {1,10}]
  %s2 = inlined_call_operand.vmem [shape: f32[16,2,96], index: 2, kind: input, shape index: {}]
  %s3 = inlined_call_operand.vmem [shape: f32[6,32], index: 3, kind: input, shape index: {}]
  %s4 = inlined_call_operand.vmem [shape: f32[4,96], index: 4, kind: input, shape index: {}]
  %s5 = inlined_call_operand.vmem [shape: bf16[32,32], index: 5, kind: input, shape index: {}]
  %s6 = inlined_call_operand.vmem [shape: bf16[32,32], index: 6, kind: input, shape index: {}]
  %s7 = inlined_call_operand.vmem [shape: bf16[96,96], index: 7, kind: input, shape index: {}]
  %s8 = inlined_call_operand.vmem [shape: bf16[96,96], index: 8, kind: input, shape index: {}]
  %s9 = inlined_call_operand.vmem [shape: f32[16,16,96], index: 9, kind: output, shape index: {0}, may-alias: {0,9}]
  %s10 = inlined_call_operand.vmem [shape: f32[16,16,96], index: 10, kind: output, shape index: {1}, may-alias: {1,10}]
  %11 = xla_tuple %s9, %s10
  %s12 = sld [smem:[#allocation0]]
  $region77: #{hfcim_forward.1} parent=0
    _
  %s14 = ssub.s32 1, %s12
  %s15 = scalar_select 0, %s14, %s12
  loop: start=0, step=1, limit=6
  $region2: #{hfcim_forward.1} parent=0 // loop_pre_header
    _
  $region3: #{hfcim_forward.1} parent=0 // loop_header
    %s17 = sphi 0, %s21
    %p18 = scmp.ge.s32.totalorder %s17, 6
    %s27 = sphi 0, %s29
    %s30 = sphi 0, %s27
    %s31 = sphi 0, %s30
    %s47 = sphi 0, %s31
    %s53 = sphi 0, %s55
    %s56 = sphi 0, %s53
    %s57 = sphi 0, %s56
    %s73 = sphi 0, %s57
    %s79 = sphi 0, %s81
    %s82 = sphi 0, %s79
    %s83 = sphi 0, %s82
    %s99 = sphi 0, %s83
    %s103 = sphi 0, %s103
    %s105 = sphi 0, %s103
    %s106 = sphi 0, %s105
    %s120 = sphi 0, %s106
    %s124 = sphi 0, %s124
    %s126 = sphi 0, %s124
    %s127 = sphi 0, %s126
    %s141 = sphi 0, %s127
    %s145 = sphi 0, %s145
    %s147 = sphi 0, %s145
    %s148 = sphi 0, %s147
    %s162 = sphi 0, %s148
    %s166 = sphi 0, %s166
    %s168 = sphi 0, %s166
    %s169 = sphi 0, %s168
    %s183 = sphi 0, %s169
    %s187 = sphi 0, %s187
    %s189 = sphi 0, %s187
    %s190 = sphi 0, %s189
    %s204 = sphi 0, %s190
    %s208 = sphi 0, %s208
    %s210 = sphi 0, %s208
    %s211 = sphi 0, %s210
    %s225 = sphi 0, %s211
    %s231 = sphi 0, %s233
    %s234 = sphi 0, %s231
    %s235 = sphi 0, %s234
    %s251 = sphi 0, %s235
    %s257 = sphi 0, %s259
    %s260 = sphi 0, %s257
    %s261 = sphi 0, %s260
    %s277 = sphi 0, %s261
  $region4: #{hfcim_forward.1} parent=0 // loop_header_branch
    %20 = sbr.rel (%p18) target = $region8
  $region5: #{hfcim_forward.1} parent=0 // loop_body
    %s22 = ssub.s32 %s17, 1
    %s23 = ssub.s32 %s17, 2
    %s24 = sadd.s32 %s17, 1
    %s25 = ssub.s32 %s17, %s24
    %p26 = scmp.eq.s32.totalorder %s25, 0
    %s28 = sadd.s32 %s27, 1
    %s29 = scalar_select %p26, %s27, %s28
    %p32 = pneg %p26
    %p33 = scmp.eq.s32.totalorder %s17, 3
    %p34 = por %p32, %p33
    %p35 = scmp.ne.s32.totalorder %s27, %s30
    %p36 = scmp.eq.s32.totalorder %s17, 0
    %p37 = por %p35, %p36
    %p38 = scmp.ne.s32.totalorder %s27, %s30
    %p39 = scmp.eq.s32.totalorder %s22, 3
    %p40 = por %p38, %p39
    %p41 = scmp.ne.s32.totalorder %s30, %s31
    %p42 = scmp.eq.s32.totalorder %s22, 0
    %p43 = por %p41, %p42
    %p44 = scmp.ne.s32.totalorder %s30, %s31
    %p45 = scmp.eq.s32.totalorder %s23, 3
    %p46 = por %p44, %p45
    %p48 = scmp.ne.s32.totalorder %s31, %s47
    %p49 = scmp.eq.s32.totalorder %s23, 0
    %p50 = por %p48, %p49
    %s51 = ssub.s32 %s17, %s24
    %p52 = scmp.eq.s32.totalorder %s51, 0
    %s54 = sadd.s32 %s53, 1
    %s55 = scalar_select %p52, %s53, %s54
    %p58 = pneg %p52
    %p59 = scmp.eq.s32.totalorder %s17, 3
    %p60 = por %p58, %p59
    %p61 = scmp.ne.s32.totalorder %s53, %s56
    %p62 = scmp.eq.s32.totalorder %s17, 0
    %p63 = por %p61, %p62
    %p64 = scmp.ne.s32.totalorder %s53, %s56
    %p65 = scmp.eq.s32.totalorder %s22, 3
    %p66 = por %p64, %p65
    %p67 = scmp.ne.s32.totalorder %s56, %s57
    %p68 = scmp.eq.s32.totalorder %s22, 0
    %p69 = por %p67, %p68
    %p70 = scmp.ne.s32.totalorder %s56, %s57
    %p71 = scmp.eq.s32.totalorder %s23, 3
    %p72 = por %p70, %p71
    %p74 = scmp.ne.s32.totalorder %s57, %s73
    %p75 = scmp.eq.s32.totalorder %s23, 0
    %p76 = por %p74, %p75
    %s77 = ssub.s32 %s17, %s24
    %p78 = scmp.eq.s32.totalorder %s77, 0
    %s80 = sadd.s32 %s79, 1
    %s81 = scalar_select %p78, %s79, %s80
    %p84 = pneg %p78
    %p85 = scmp.eq.s32.totalorder %s17, 3
    %p86 = por %p84, %p85
    %p87 = scmp.ne.s32.totalorder %s79, %s82
    %p88 = scmp.eq.s32.totalorder %s17, 0
    %p89 = por %p87, %p88
    %p90 = scmp.ne.s32.totalorder %s79, %s82
    %p91 = scmp.eq.s32.totalorder %s22, 3
    %p92 = por %p90, %p91
    %p93 = scmp.ne.s32.totalorder %s82, %s83
    %p94 = scmp.eq.s32.totalorder %s22, 0
    %p95 = por %p93, %p94
    %p96 = scmp.ne.s32.totalorder %s82, %s83
    %p97 = scmp.eq.s32.totalorder %s23, 3
    %p98 = por %p96, %p97
    %p100 = scmp.ne.s32.totalorder %s83, %s99
    %p101 = scmp.eq.s32.totalorder %s23, 0
    %p102 = por %p100, %p101
    %s104 = sadd.s32 %s103, 1
    %p107 = scmp.eq.s32.totalorder %s17, 3
    %p108 = scmp.ne.s32.totalorder %s103, %s105
    %p109 = scmp.eq.s32.totalorder %s17, 0
    %p110 = por %p108, %p109
    %p111 = scmp.ne.s32.totalorder %s103, %s105
    %p112 = scmp.eq.s32.totalorder %s22, 3
    %p113 = por %p111, %p112
    %p114 = scmp.ne.s32.totalorder %s105, %s106
    %p115 = scmp.eq.s32.totalorder %s22, 0
    %p116 = por %p114, %p115
    %p117 = scmp.ne.s32.totalorder %s105, %s106
    %p118 = scmp.eq.s32.totalorder %s23, 3
    %p119 = por %p117, %p118
    %p121 = scmp.ne.s32.totalorder %s106, %s120
    %p122 = scmp.eq.s32.totalorder %s23, 0
    %p123 = por %p121, %p122
    %s125 = sadd.s32 %s124, 1
    %p128 = scmp.eq.s32.totalorder %s17, 3
    %p129 = scmp.ne.s32.totalorder %s124, %s126
    %p130 = scmp.eq.s32.totalorder %s17, 0
    %p131 = por %p129, %p130
    %p132 = scmp.ne.s32.totalorder %s124, %s126
    %p133 = scmp.eq.s32.totalorder %s22, 3
    %p134 = por %p132, %p133
    %p135 = scmp.ne.s32.totalorder %s126, %s127
    %p136 = scmp.eq.s32.totalorder %s22, 0
    %p137 = por %p135, %p136
    %p138 = scmp.ne.s32.totalorder %s126, %s127
    %p139 = scmp.eq.s32.totalorder %s23, 3
    %p140 = por %p138, %p139
    %p142 = scmp.ne.s32.totalorder %s127, %s141
    %p143 = scmp.eq.s32.totalorder %s23, 0
    %p144 = por %p142, %p143
    %s146 = sadd.s32 %s145, 1
    %p149 = scmp.eq.s32.totalorder %s17, 3
    %p150 = scmp.ne.s32.totalorder %s145, %s147
    %p151 = scmp.eq.s32.totalorder %s17, 0
    %p152 = por %p150, %p151
    %p153 = scmp.ne.s32.totalorder %s145, %s147
    %p154 = scmp.eq.s32.totalorder %s22, 3
    %p155 = por %p153, %p154
    %p156 = scmp.ne.s32.totalorder %s147, %s148
    %p157 = scmp.eq.s32.totalorder %s22, 0
    %p158 = por %p156, %p157
    %p159 = scmp.ne.s32.totalorder %s147, %s148
    %p160 = scmp.eq.s32.totalorder %s23, 3
    %p161 = por %p159, %p160
    %p163 = scmp.ne.s32.totalorder %s148, %s162
    %p164 = scmp.eq.s32.totalorder %s23, 0
    %p165 = por %p163, %p164
    %s167 = sadd.s32 %s166, 1
    %p170 = scmp.eq.s32.totalorder %s17, 3
    %p171 = scmp.ne.s32.totalorder %s166, %s168
    %p172 = scmp.eq.s32.totalorder %s17, 0
    %p173 = por %p171, %p172
    %p174 = scmp.ne.s32.totalorder %s166, %s168
    %p175 = scmp.eq.s32.totalorder %s22, 3
    %p176 = por %p174, %p175
    %p177 = scmp.ne.s32.totalorder %s168, %s169
    %p178 = scmp.eq.s32.totalorder %s22, 0
    %p179 = por %p177, %p178
    %p180 = scmp.ne.s32.totalorder %s168, %s169
    %p181 = scmp.eq.s32.totalorder %s23, 3
    %p182 = por %p180, %p181
    %p184 = scmp.ne.s32.totalorder %s169, %s183
    %p185 = scmp.eq.s32.totalorder %s23, 0
    %p186 = por %p184, %p185
    %s188 = sadd.s32 %s187, 1
    %p191 = scmp.eq.s32.totalorder %s17, 3
    %p192 = scmp.ne.s32.totalorder %s187, %s189
    %p193 = scmp.eq.s32.totalorder %s17, 0
    %p194 = por %p192, %p193
    %p195 = scmp.ne.s32.totalorder %s187, %s189
    %p196 = scmp.eq.s32.totalorder %s22, 3
    %p197 = por %p195, %p196
    %p198 = scmp.ne.s32.totalorder %s189, %s190
    %p199 = scmp.eq.s32.totalorder %s22, 0
    %p200 = por %p198, %p199
    %p201 = scmp.ne.s32.totalorder %s189, %s190
    %p202 = scmp.eq.s32.totalorder %s23, 3
    %p203 = por %p201, %p202
    %p205 = scmp.ne.s32.totalorder %s190, %s204
    %p206 = scmp.eq.s32.totalorder %s23, 0
    %p207 = por %p205, %p206
    %s209 = sadd.s32 %s208, 1
    %p212 = scmp.eq.s32.totalorder %s17, 3
    %p213 = scmp.ne.s32.totalorder %s208, %s210
    %p214 = scmp.eq.s32.totalorder %s17, 0
    %p215 = por %p213, %p214
    %p216 = scmp.ne.s32.totalorder %s208, %s210
    %p217 = scmp.eq.s32.totalorder %s22, 3
    %p218 = por %p216, %p217
    %p219 = scmp.ne.s32.totalorder %s210, %s211
    %p220 = scmp.eq.s32.totalorder %s22, 0
    %p221 = por %p219, %p220
    %p222 = scmp.ne.s32.totalorder %s210, %s211
    %p223 = scmp.eq.s32.totalorder %s23, 3
    %p224 = por %p222, %p223
    %p226 = scmp.ne.s32.totalorder %s211, %s225
    %p227 = scmp.eq.s32.totalorder %s23, 0
    %p228 = por %p226, %p227
    %s229 = ssub.s32 %s17, %s24
    %p230 = scmp.eq.s32.totalorder %s229, 0
    %s232 = sadd.s32 %s231, 1
    %s233 = scalar_select %p230, %s231, %s232
    %p236 = pneg %p230
    %p237 = scmp.eq.s32.totalorder %s17, 3
    %p238 = por %p236, %p237
    %p239 = scmp.ne.s32.totalorder %s231, %s234
    %p240 = scmp.eq.s32.totalorder %s17, 0
    %p241 = por %p239, %p240
    %p242 = scmp.ne.s32.totalorder %s231, %s234
    %p243 = scmp.eq.s32.totalorder %s22, 3
    %p244 = por %p242, %p243
    %p245 = scmp.ne.s32.totalorder %s234, %s235
    %p246 = scmp.eq.s32.totalorder %s22, 0
    %p247 = por %p245, %p246
    %p248 = scmp.ne.s32.totalorder %s234, %s235
    %p249 = scmp.eq.s32.totalorder %s23, 3
    %p250 = por %p248, %p249
    %p252 = scmp.ne.s32.totalorder %s235, %s251
    %p253 = scmp.eq.s32.totalorder %s23, 0
    %p254 = por %p252, %p253
    %s255 = ssub.s32 %s17, %s24
    %p256 = scmp.eq.s32.totalorder %s255, 0
    %s258 = sadd.s32 %s257, 1
    %s259 = scalar_select %p256, %s257, %s258
    %p262 = pneg %p256
    %p263 = scmp.eq.s32.totalorder %s17, 3
    %p264 = por %p262, %p263
    %p265 = scmp.ne.s32.totalorder %s257, %s260
    %p266 = scmp.eq.s32.totalorder %s17, 0
    %p267 = por %p265, %p266
    %p268 = scmp.ne.s32.totalorder %s257, %s260
    %p269 = scmp.eq.s32.totalorder %s22, 3
    %p270 = por %p268, %p269
    %p271 = scmp.ne.s32.totalorder %s260, %s261
    %p272 = scmp.eq.s32.totalorder %s22, 0
    %p273 = por %p271, %p272
    %p274 = scmp.ne.s32.totalorder %s260, %s261
    %p275 = scmp.eq.s32.totalorder %s23, 3
    %p276 = por %p274, %p275
    %p278 = scmp.ne.s32.totalorder %s261, %s277
    %p279 = scmp.eq.s32.totalorder %s23, 0
    %p280 = por %p278, %p279
    %p281 = scmp.le.s32.totalorder 1, %s17
    %p282 = scmp.lt.s32.totalorder %s17, 5
    %p283 = pnand %p281, %p282
    %p284 = pneg %p283
    // Predicated region
    $region9: #{hfcim_forward.1} parent=5 // pred_check
      _
    $region10: #{hfcim_forward.1} parent=5 // pred_check_branch
      %286 = sbr.rel (%p283) target = $region12
    $region11: #{hfcim_forward.1} parent=5 // pred_region
      %s287 = ssub.s32 %s17, 1
      // Predicated region
      $region13: #{hfcim_forward.1} parent=11 // pred_check
        %p288 = pneg %p116
      $region14: #{hfcim_forward.1} parent=11 // pred_check_branch
        %290 = sbr.rel (%p288) target = $region16
      $region15: #{hfcim_forward.1} parent=11 // pred_region
        _
      $region16: #{hfcim_forward.1} parent=11 // pred_fallthru
        _
      // Predicated region
      $region17: #{hfcim_forward.1} parent=11 // pred_check
        %p291 = pneg %p137
      $region18: #{hfcim_forward.1} parent=11 // pred_check_branch
        %293 = sbr.rel (%p291) target = $region20
      $region19: #{hfcim_forward.1} parent=11 // pred_region
        _
      $region20: #{hfcim_forward.1} parent=11 // pred_fallthru
        _
      // Predicated region
      $region21: #{hfcim_forward.1} parent=11 // pred_check
        %p294 = pneg %p158
      $region22: #{hfcim_forward.1} parent=11 // pred_check_branch
        %296 = sbr.rel (%p294) target = $region24
      $region23: #{hfcim_forward.1} parent=11 // pred_region
        _
      $region24: #{hfcim_forward.1} parent=11 // pred_fallthru
        _
      // Predicated region
      $region25: #{hfcim_forward.1} parent=11 // pred_check
        %p297 = pneg %p179
      $region26: #{hfcim_forward.1} parent=11 // pred_check_branch
        %299 = sbr.rel (%p297) target = $region28
      $region27: #{hfcim_forward.1} parent=11 // pred_region
        _
      $region28: #{hfcim_forward.1} parent=11 // pred_fallthru
        _
      // Predicated region
      $region29: #{hfcim_forward.1} parent=11 // pred_check
        %p300 = pneg %p200
      $region30: #{hfcim_forward.1} parent=11 // pred_check_branch
        %302 = sbr.rel (%p300) target = $region32
      $region31: #{hfcim_forward.1} parent=11 // pred_region
        _
      $region32: #{hfcim_forward.1} parent=11 // pred_fallthru
        _
      // Predicated region
      $region33: #{hfcim_forward.1} parent=11 // pred_check
        %p303 = pneg %p221
      $region34: #{hfcim_forward.1} parent=11 // pred_check_branch
        %305 = sbr.rel (%p303) target = $region36
      $region35: #{hfcim_forward.1} parent=11 // pred_region
        _
      $region36: #{hfcim_forward.1} parent=11 // pred_fallthru
        _
    $region12: #{hfcim_forward.1} parent=5 // pred_fallthru
      _
    %p306 = scmp.lt.s32.totalorder %s17, 4
    // Predicated region
    $region37: #{hfcim_forward.1} parent=5 // pred_check
      %p307 = pneg %p306
    $region38: #{hfcim_forward.1} parent=5 // pred_check_branch
      %309 = sbr.rel (%p307) target = $region40
    $region39: #{hfcim_forward.1} parent=5 // pred_region
      // Predicated region
      $region41: #{hfcim_forward.1} parent=39 // pred_check
        %p310 = pneg %p37
      $region42: #{hfcim_forward.1} parent=39 // pred_check_branch
        %312 = sbr.rel (%p310) target = $region44
      $region43: #{hfcim_forward.1} parent=39 // pred_region
        %s313 = smul.u32 4, %s17
        %p314 = scmp.lt.s32.totalorder %s313, 15
        %s315 = scalar_select %p314, %s313, 15
        %s316 = smul.addr %s315, 2
        %s317 = smul.addr %s316, 8
        %s318 = scalar_lea.vmem %s0, %s317
        %s319 = smul.u32 4, %s17
      $region44: #{hfcim_forward.1} parent=39 // pred_fallthru
        _
      // Predicated region
      $region45: #{hfcim_forward.1} parent=39 // pred_check
        %p320 = pneg %p63
      $region46: #{hfcim_forward.1} parent=39 // pred_check_branch
        %322 = sbr.rel (%p320) target = $region48
      $region47: #{hfcim_forward.1} parent=39 // pred_region
        %s323 = smul.u32 4, %s17
        %p324 = scmp.lt.s32.totalorder %s323, 15
        %s325 = scalar_select %p324, %s323, 15
        %s326 = smul.addr %s325, 2
        %s327 = smul.addr %s326, 8
        %s328 = scalar_lea.vmem %s1, %s327
        %s329 = smul.u32 4, %s17
      $region48: #{hfcim_forward.1} parent=39 // pred_fallthru
        _
      // Predicated region
      $region49: #{hfcim_forward.1} parent=39 // pred_check
        %p330 = pneg %p89
      $region50: #{hfcim_forward.1} parent=39 // pred_check_branch
        %332 = sbr.rel (%p330) target = $region52
      $region51: #{hfcim_forward.1} parent=39 // pred_region
        %s333 = smul.u32 4, %s17
        %p334 = scmp.lt.s32.totalorder %s333, 15
        %s335 = scalar_select %p334, %s333, 15
        %s336 = smul.addr %s335, 2
        %s337 = scalar_lea.vmem %s2, %s336
        %s338 = smul.u32 4, %s17
      $region52: #{hfcim_forward.1} parent=39 // pred_fallthru
        _
    $region40: #{hfcim_forward.1} parent=5 // pred_fallthru
      _
    %p339 = scmp.le.s32.totalorder 1, %s17
    %p340 = scmp.lt.s32.totalorder %s17, 5
    %p341 = pnand %p339, %p340
    %p342 = pneg %p341
    // Predicated region
    $region53: #{hfcim_forward.1} parent=5 // pred_check
      _
    $region54: #{hfcim_forward.1} parent=5 // pred_check_branch
      %344 = sbr.rel (%p341) target = $region56
    $region55: #{hfcim_forward.1} parent=5 // pred_region
      %s345 = ssub.s32 %s17, 1
      %s346 = smul.u32 4, %s22
      %p347 = scmp.lt.s32.totalorder %s346, 15
      %s348 = scalar_select %p347, %s346, 15
      %s349 = smul.addr %s348, 2
      %s350 = smul.addr %s349, 8
      %s351 = scalar_lea.vmem %s0, %s350
      %p352 = pneg %p43
      %p353 = pneg %p40
      %s354 = smul.u32 4, %s22
      %p355 = scmp.lt.s32.totalorder %s354, 15
      %s356 = scalar_select %p355, %s354, 15
      %s357 = smul.addr %s356, 2
      %s358 = smul.addr %s357, 8
      %s359 = scalar_lea.vmem %s1, %s358
      %p360 = pneg %p69
      %p361 = pneg %p66
      %s362 = smul.u32 4, %s22
      %p363 = scmp.lt.s32.totalorder %s362, 15
      %s364 = scalar_select %p363, %s362, 15
      %s365 = smul.addr %s364, 2
      %s366 = scalar_lea.vmem %s2, %s365
      %p367 = pneg %p95
      %p368 = pneg %p92
      %p369 = pneg %p116
      %p370 = pneg %p113
      %p371 = pneg %p137
      %p372 = pneg %p134
      %p373 = pneg %p158
      %p374 = pneg %p155
      %p375 = pneg %p179
      %p376 = pneg %p176
      %p377 = pneg %p200
      %p378 = pneg %p197
      %p379 = pneg %p221
      %p380 = pneg %p218
      %p381 = pneg %p247
      %p382 = pneg %p244
      %s383 = smul.u32 4, %s22
      %p384 = scmp.lt.s32.totalorder %s383, 15
      %s385 = scalar_select %p384, %s383, 15
      %s386 = smul.addr %s385, 2
      %s387 = smul.addr %s386, 8
      %s388 = scalar_lea.vmem %s9, %s387
      %p389 = pneg %p273
      %p390 = pneg %p270
      %s391 = smul.u32 4, %s22
      %p392 = scmp.lt.s32.totalorder %s391, 15
      %s393 = scalar_select %p392, %s391, 15
      %s394 = smul.addr %s393, 2
      %s395 = smul.addr %s394, 8
      %s396 = scalar_lea.vmem %s10, %s395
      %s397 = smul.u32 4, %s22
      %p398 = scmp.lt.s32.totalorder %s397, 15
      %s399 = scalar_select %p398, %s397, 15
      %s400 = smul.addr %s399, 2
      %s401 = smul.addr %s400, 8
      %s402 = scalar_lea.vmem %s0, %s401
      %s403 = smul.u32 4, %s22
      %s404 = smul.u32 4, %s22
      %p405 = scmp.lt.s32.totalorder %s404, 15
      %s406 = scalar_select %p405, %s404, 15
      %s407 = smul.addr %s406, 2
      %s408 = smul.addr %s407, 8
      %s409 = scalar_lea.vmem %s1, %s408
      %s410 = smul.u32 4, %s22
      %s411 = smul.u32 4, %s22
      %p412 = scmp.lt.s32.totalorder %s411, 15
      %s413 = scalar_select %p412, %s411, 15
      %s414 = smul.addr %s413, 2
      %s415 = scalar_lea.vmem %s2, %s414
      %s416 = smul.u32 4, %s22
      %s417 = smul.u32 4, %s22
      %p418 = scmp.lt.s32.totalorder %s417, 15
      %s419 = scalar_select %p418, %s417, 15
      %s420 = smul.addr %s419, 2
      %s421 = smul.addr %s420, 8
      %s422 = scalar_lea.vmem %s9, %s421
      %s423 = smul.u32 4, %s22
      %s424 = smul.u32 4, %s22
      %p425 = scmp.lt.s32.totalorder %s424, 15
      %s426 = scalar_select %p425, %s424, 15
      %s427 = smul.addr %s426, 2
      %s428 = smul.addr %s427, 8
      %s429 = scalar_lea.vmem %s10, %s428
      %s430 = smul.u32 4, %s22
      %v432 = vld [vmem:[%s3] sm:$0x1]
      %v433 = vld [vmem:[%s3 + $0x1] sm:$0x1]
      %v434 = vld [vmem:[%s3 + $0x2] sm:$0x1]
      %v435 = vld [vmem:[%s3 + $0x3] sm:$0x1]
      %v436 = vld [vmem:[%s3 + $0x4] sm:$0x1]
      %v437 = vld [vmem:[%s3 + $0x5] sm:$0x1]
      %v438 = vld [vmem:[%s4] sm:$0x1]
      %v439 = vld [vmem:[%s4 + $0x1] sm:$0x1]
      %v440 = vld [vmem:[%s4 + $0x2] sm:$0x1]
      %v441 = vld [vmem:[%s4 + $0x3] sm:$0x1]
      %v442 = vld [vmem:[%s402] sm:$0xff]
      %v443 = vld [vmem:[%s402 + $0x8] sm:$0xff]
      %v444 = vld [vmem:[%s402 + $0x10] sm:$0xff]
      %v445 = vld [vmem:[%s402 + $0x18] sm:$0xff]
      %v446 = vld [vmem:[%s402 + $0x20] sm:$0xff]
      %v447 = vld [vmem:[%s402 + $0x28] sm:$0xff]
      %v448 = vld [vmem:[%s402 + $0x30] sm:$0xff]
      %v449 = vld [vmem:[%s402 + $0x38] sm:$0xff]
      %v450 = vld [vmem:[%s409] sm:$0xff]
      %v451 = vld [vmem:[%s409 + $0x8] sm:$0xff]
      %v452 = vld [vmem:[%s409 + $0x10] sm:$0xff]
      %v453 = vld [vmem:[%s409 + $0x18] sm:$0xff]
      %v454 = vld [vmem:[%s409 + $0x20] sm:$0xff]
      %v455 = vld [vmem:[%s409 + $0x28] sm:$0xff]
      %v456 = vld [vmem:[%s409 + $0x30] sm:$0xff]
      %v457 = vld [vmem:[%s409 + $0x38] sm:$0xff]
      %v458 = vld [vmem:[%s415] sm:$0x1]
      %v459 = vld [vmem:[%s415 + $0x2] sm:$0x1]
      %v460 = vld [vmem:[%s415 + $0x4] sm:$0x1]
      %v461 = vld [vmem:[%s415 + $0x6] sm:$0x1]
      %v462 = vld [vmem:[%s415 + $0x1] sm:$0x1]
      %v463 = vld [vmem:[%s415 + $0x3] sm:$0x1]
      %v464 = vld [vmem:[%s415 + $0x5] sm:$0x1]
      %v465 = vld [vmem:[%s415 + $0x7] sm:$0x1]
      %v466 = vlaneseq
      %v467 = vshrl.u32 %v466, 7
      %v468 = vsub.s32 0, %v467
      %v469 = vrot.slane %v458, %v468
      %v470 = vlaneseq
      %v471 = vshrl.u32 %v470, 7
      %v472 = vsub.s32 0, %v471
      %v473 = vrot.slane %v459, %v472
      %v474 = vlaneseq
      %v475 = vshrl.u32 %v474, 7
      %v476 = vsub.s32 0, %v475
      %v477 = vrot.slane %v460, %v476
      %v478 = vlaneseq
      %v479 = vshrl.u32 %v478, 7
      %v480 = vsub.s32 0, %v479
      %v481 = vrot.slane %v461, %v480
      %v482 = vmul.f32 %v442, %v469
      %v483 = vmul.f32 %v443, %v469
      %v484 = vmul.f32 %v444, %v473
      %v485 = vmul.f32 %v445, %v473
      %v486 = vmul.f32 %v446, %v477
      %v487 = vmul.f32 %v447, %v477
      %v488 = vmul.f32 %v448, %v481
      %v489 = vmul.f32 %v449, %v481
      %v490 = vlaneseq
      %v491 = vshrl.u32 %v490, 7
      %v492 = vsub.s32 0, %v491
      %v493 = vrot.slane %v462, %v492
      %v494 = vlaneseq
      %v495 = vshrl.u32 %v494, 7
      %v496 = vsub.s32 0, %v495
      %v497 = vrot.slane %v463, %v496
      %v498 = vlaneseq
      %v499 = vshrl.u32 %v498, 7
      %v500 = vsub.s32 0, %v499
      %v501 = vrot.slane %v464, %v500
      %v502 = vlaneseq
      %v503 = vshrl.u32 %v502, 7
      %v504 = vsub.s32 0, %v503
      %v505 = vrot.slane %v465, %v504
      %v506 = vmul.f32 %v450, %v493
      %v507 = vmul.f32 %v451, %v493
      %v508 = vmul.f32 %v452, %v497
      %v509 = vmul.f32 %v453, %v497
      %v510 = vmul.f32 %v454, %v501
      %v511 = vmul.f32 %v455, %v501
      %v512 = vmul.f32 %v456, %v505
      %v513 = vmul.f32 %v457, %v505
      %522 = vrot.lane.b32.xlu0 %v482, 96
      %v523 = vpop.permute.xlu0 %522
      %524 = vrot.lane.b32.xlu0 %v483, 96
      %v525 = vpop.permute.xlu0 %524
      %526 = vrot.lane.b32.xlu0 %v484, 96
      %v527 = vpop.permute.xlu0 %526
      %528 = vrot.lane.b32.xlu0 %v485, 96
      %v529 = vpop.permute.xlu0 %528
      %530 = vrot.lane.b32.xlu0 %v486, 96
      %v531 = vpop.permute.xlu0 %530
      %532 = vrot.lane.b32.xlu0 %v487, 96
      %v533 = vpop.permute.xlu0 %532
      %534 = vrot.lane.b32.xlu0 %v488, 96
      %v535 = vpop.permute.xlu0 %534
      %536 = vrot.lane.b32.xlu0 %v489, 96
      %v537 = vpop.permute.xlu0 %536
      %v546 = vadd.f32 %v482, %v523
      %v547 = vadd.f32 %v483, %v525
      %v548 = vadd.f32 %v484, %v527
      %v549 = vadd.f32 %v485, %v529
      %v550 = vadd.f32 %v486, %v531
      %v551 = vadd.f32 %v487, %v533
      %v552 = vadd.f32 %v488, %v535
      %v553 = vadd.f32 %v489, %v537
      %554 = vrot.lane.b32.xlu0 %v482, 64
      %v555 = vpop.permute.xlu0 %554
      %556 = vrot.lane.b32.xlu0 %v483, 64
      %v557 = vpop.permute.xlu0 %556
      %558 = vrot.lane.b32.xlu0 %v484, 64
      %v559 = vpop.permute.xlu0 %558
      %560 = vrot.lane.b32.xlu0 %v485, 64
      %v561 = vpop.permute.xlu0 %560
      %562 = vrot.lane.b32.xlu0 %v486, 64
      %v563 = vpop.permute.xlu0 %562
      %564 = vrot.lane.b32.xlu0 %v487, 64
      %v565 = vpop.permute.xlu0 %564
      %566 = vrot.lane.b32.xlu0 %v488, 64
      %v567 = vpop.permute.xlu0 %566
      %568 = vrot.lane.b32.xlu0 %v489, 64
      %v569 = vpop.permute.xlu0 %568
      %v578 = vadd.f32 %v546, %v555
      %v579 = vadd.f32 %v547, %v557
      %v580 = vadd.f32 %v548, %v559
      %v581 = vadd.f32 %v549, %v561
      %v582 = vadd.f32 %v550, %v563
      %v583 = vadd.f32 %v551, %v565
      %v584 = vadd.f32 %v552, %v567
      %v585 = vadd.f32 %v553, %v569
      %594 = vrot.lane.b32.xlu0 %v506, 96
      %v595 = vpop.permute.xlu0 %594
      %596 = vrot.lane.b32.xlu0 %v507, 96
      %v597 = vpop.permute.xlu0 %596
      %598 = vrot.lane.b32.xlu0 %v508, 96
      %v599 = vpop.permute.xlu0 %598
      %600 = vrot.lane.b32.xlu0 %v509, 96
      %v601 = vpop.permute.xlu0 %600
      %602 = vrot.lane.b32.xlu0 %v510, 96
      %v603 = vpop.permute.xlu0 %602
      %604 = vrot.lane.b32.xlu0 %v511, 96
      %v605 = vpop.permute.xlu0 %604
      %606 = vrot.lane.b32.xlu0 %v512, 96
      %v607 = vpop.permute.xlu0 %606
      %608 = vrot.lane.b32.xlu0 %v513, 96
      %v609 = vpop.permute.xlu0 %608
      %v618 = vadd.f32 %v506, %v595
      %v619 = vadd.f32 %v507, %v597
      %v620 = vadd.f32 %v508, %v599
      %v621 = vadd.f32 %v509, %v601
      %v622 = vadd.f32 %v510, %v603
      %v623 = vadd.f32 %v511, %v605
      %v624 = vadd.f32 %v512, %v607
      %v625 = vadd.f32 %v513, %v609
      %626 = vrot.lane.b32.xlu0 %v506, 64
      %v627 = vpop.permute.xlu0 %626
      %628 = vrot.lane.b32.xlu0 %v507, 64
      %v629 = vpop.permute.xlu0 %628
      %630 = vrot.lane.b32.xlu0 %v508, 64
      %v631 = vpop.permute.xlu0 %630
      %632 = vrot.lane.b32.xlu0 %v509, 64
      %v633 = vpop.permute.xlu0 %632
      %634 = vrot.lane.b32.xlu0 %v510, 64
      %v635 = vpop.permute.xlu0 %634
      %636 = vrot.lane.b32.xlu0 %v511, 64
      %v637 = vpop.permute.xlu0 %636
      %638 = vrot.lane.b32.xlu0 %v512, 64
      %v639 = vpop.permute.xlu0 %638
      %640 = vrot.lane.b32.xlu0 %v513, 64
      %v641 = vpop.permute.xlu0 %640
      %v650 = vadd.f32 %v618, %v627
      %v651 = vadd.f32 %v619, %v629
      %v652 = vadd.f32 %v620, %v631
      %v653 = vadd.f32 %v621, %v633
      %v654 = vadd.f32 %v622, %v635
      %v655 = vadd.f32 %v623, %v637
      %v656 = vadd.f32 %v624, %v639
      %v657 = vadd.f32 %v625, %v641
      %vm658 = vcmask 261120
      %v659 = vsel %vm658, %v578, 0.0
      %660 = vadd.xlane.f32.xlu0 %v659
      %v661 = vpop.xlane.xlu0 %660
      %v662 = vsel %vm658, %v579, 0.0
      %663 = vadd.xlane.f32.xlu0 %v662
      %v664 = vpop.xlane.xlu0 %663
      %v665 = vsel %vm658, %v580, 0.0
      %666 = vadd.xlane.f32.xlu0 %v665
      %v667 = vpop.xlane.xlu0 %666
      %v668 = vsel %vm658, %v581, 0.0
      %669 = vadd.xlane.f32.xlu0 %v668
      %v670 = vpop.xlane.xlu0 %669
      %v671 = vsel %vm658, %v582, 0.0
      %672 = vadd.xlane.f32.xlu0 %v671
      %v673 = vpop.xlane.xlu0 %672
      %v674 = vsel %vm658, %v583, 0.0
      %675 = vadd.xlane.f32.xlu0 %v674
      %v676 = vpop.xlane.xlu0 %675
      %v677 = vsel %vm658, %v584, 0.0
      %678 = vadd.xlane.f32.xlu0 %v677
      %v679 = vpop.xlane.xlu0 %678
      %v680 = vsel %vm658, %v585, 0.0
      %681 = vadd.xlane.f32.xlu0 %v680
      %v682 = vpop.xlane.xlu0 %681
      %v683 = vrcp.pop 32.0
      %v684 = vmul.f32 %v661, %v683
      %v685 = vmul.f32 %v664, %v683
      %v686 = vmul.f32 %v667, %v683
      %v687 = vmul.f32 %v670, %v683
      %v688 = vmul.f32 %v673, %v683
      %v689 = vmul.f32 %v676, %v683
      %v690 = vmul.f32 %v679, %v683
      %v691 = vmul.f32 %v682, %v683
      %v692 = vsub.f32 %v578, %v684
      %v693 = vsub.f32 %v579, %v685
      %v694 = vsub.f32 %v580, %v686
      %v695 = vsub.f32 %v581, %v687
      %v696 = vsub.f32 %v582, %v688
      %v697 = vsub.f32 %v583, %v689
      %v698 = vsub.f32 %v584, %v690
      %v699 = vsub.f32 %v585, %v691
      %v700 = vmul.f32 %v692, %v692
      %v701 = vmul.f32 %v693, %v693
      %v702 = vmul.f32 %v694, %v694
      %v703 = vmul.f32 %v695, %v695
      %v704 = vmul.f32 %v696, %v696
      %v705 = vmul.f32 %v697, %v697
      %v706 = vmul.f32 %v698, %v698
      %v707 = vmul.f32 %v699, %v699
      %v708 = vsel %vm658, %v700, 0.0
      %709 = vadd.xlane.f32.xlu0 %v708
      %v710 = vpop.xlane.xlu0 %709
      %v711 = vsel %vm658, %v701, 0.0
      %712 = vadd.xlane.f32.xlu0 %v711
      %v713 = vpop.xlane.xlu0 %712
      %v714 = vsel %vm658, %v702, 0.0
      %715 = vadd.xlane.f32.xlu0 %v714
      %v716 = vpop.xlane.xlu0 %715
      %v717 = vsel %vm658, %v703, 0.0
      %718 = vadd.xlane.f32.xlu0 %v717
      %v719 = vpop.xlane.xlu0 %718
      %v720 = vsel %vm658, %v704, 0.0
      %721 = vadd.xlane.f32.xlu0 %v720
      %v722 = vpop.xlane.xlu0 %721
      %v723 = vsel %vm658, %v705, 0.0
      %724 = vadd.xlane.f32.xlu0 %v723
      %v725 = vpop.xlane.xlu0 %724
      %v726 = vsel %vm658, %v706, 0.0
      %727 = vadd.xlane.f32.xlu0 %v726
      %v728 = vpop.xlane.xlu0 %727
      %v729 = vsel %vm658, %v707, 0.0
      %730 = vadd.xlane.f32.xlu0 %v729
      %v731 = vpop.xlane.xlu0 %730
      %v732 = vmul.f32 %v710, %v683
      %v733 = vmul.f32 %v713, %v683
      %v734 = vmul.f32 %v716, %v683
      %v735 = vmul.f32 %v719, %v683
      %v736 = vmul.f32 %v722, %v683
      %v737 = vmul.f32 %v725, %v683
      %v738 = vmul.f32 %v728, %v683
      %v739 = vmul.f32 %v731, %v683
      %v740 = vadd.f32 %v732, 1e-06
      %v741 = vadd.f32 %v733, 1e-06
      %v742 = vadd.f32 %v734, 1e-06
      %v743 = vadd.f32 %v735, 1e-06
      %v744 = vadd.f32 %v736, 1e-06
      %v745 = vadd.f32 %v737, 1e-06
      %v746 = vadd.f32 %v738, 1e-06
      %v747 = vadd.f32 %v739, 1e-06
      %v748 = vrsqrt.pop %v740
      %v749 = vrsqrt.pop %v741
      %v750 = vrsqrt.pop %v742
      %v751 = vrsqrt.pop %v743
      %v752 = vrsqrt.pop %v744
      %v753 = vrsqrt.pop %v745
      %v754 = vrsqrt.pop %v746
      %v755 = vrsqrt.pop %v747
      %v756 = vmul.f32 %v692, %v748
      %v757 = vmul.f32 %v693, %v749
      %v758 = vmul.f32 %v694, %v750
      %v759 = vmul.f32 %v695, %v751
      %v760 = vmul.f32 %v696, %v752
      %v761 = vmul.f32 %v697, %v753
      %v762 = vmul.f32 %v698, %v754
      %v763 = vmul.f32 %v699, %v755
      %v764 = vlaneseq
      %v765 = vshrl.u32 %v764, 7
      %v766 = vsub.s32 0, %v765
      %v767 = vrot.slane %v432, %v766
      %v768 = vmul.f32 %v756, %v767
      %v769 = vmul.f32 %v757, %v767
      %v770 = vmul.f32 %v758, %v767
      %v771 = vmul.f32 %v759, %v767
      %v772 = vmul.f32 %v760, %v767
      %v773 = vmul.f32 %v761, %v767
      %v774 = vmul.f32 %v762, %v767
      %v775 = vmul.f32 %v763, %v767
      %v776 = vlaneseq
      %v777 = vshrl.u32 %v776, 7
      %v778 = vsub.s32 0, %v777
      %v779 = vrot.slane %v433, %v778
      %v780 = vadd.f32 %v768, %v779
      %v781 = vadd.f32 %v769, %v779
      %v782 = vadd.f32 %v770, %v779
      %v783 = vadd.f32 %v771, %v779
      %v784 = vadd.f32 %v772, %v779
      %v785 = vadd.f32 %v773, %v779
      %v786 = vadd.f32 %v774, %v779
      %v787 = vadd.f32 %v775, %v779
      %v788 = vpack.c.bf16 %v781, %v780
      %v789 = vpack.c.bf16 %v783, %v782
      %v790 = vpack.c.bf16 %v785, %v784
      %v791 = vpack.c.bf16 %v787, %v786
      %v792 = vsel %vm658, %v650, 0.0
      %793 = vadd.xlane.f32.xlu0 %v792
      %v794 = vpop.xlane.xlu0 %793
      %v795 = vsel %vm658, %v651, 0.0
      %796 = vadd.xlane.f32.xlu0 %v795
      %v797 = vpop.xlane.xlu0 %796
      %v798 = vsel %vm658, %v652, 0.0
      %799 = vadd.xlane.f32.xlu0 %v798
      %v800 = vpop.xlane.xlu0 %799
      %v801 = vsel %vm658, %v653, 0.0
      %802 = vadd.xlane.f32.xlu0 %v801
      %v803 = vpop.xlane.xlu0 %802
      %v804 = vsel %vm658, %v654, 0.0
      %805 = vadd.xlane.f32.xlu0 %v804
      %v806 = vpop.xlane.xlu0 %805
      %v807 = vsel %vm658, %v655, 0.0
      %808 = vadd.xlane.f32.xlu0 %v807
      %v809 = vpop.xlane.xlu0 %808
      %v810 = vsel %vm658, %v656, 0.0
      %811 = vadd.xlane.f32.xlu0 %v810
      %v812 = vpop.xlane.xlu0 %811
      %v813 = vsel %vm658, %v657, 0.0
      %814 = vadd.xlane.f32.xlu0 %v813
      %v815 = vpop.xlane.xlu0 %814
      %v816 = vmul.f32 %v794, %v683
      %v817 = vmul.f32 %v797, %v683
      %v818 = vmul.f32 %v800, %v683
      %v819 = vmul.f32 %v803, %v683
      %v820 = vmul.f32 %v806, %v683
      %v821 = vmul.f32 %v809, %v683
      %v822 = vmul.f32 %v812, %v683
      %v823 = vmul.f32 %v815, %v683
      %v824 = vsub.f32 %v650, %v816
      %v825 = vsub.f32 %v651, %v817
      %v826 = vsub.f32 %v652, %v818
      %v827 = vsub.f32 %v653, %v819
      %v828 = vsub.f32 %v654, %v820
      %v829 = vsub.f32 %v655, %v821
      %v830 = vsub.f32 %v656, %v822
      %v831 = vsub.f32 %v657, %v823
      %v832 = vmul.f32 %v824, %v824
      %v833 = vmul.f32 %v825, %v825
      %v834 = vmul.f32 %v826, %v826
      %v835 = vmul.f32 %v827, %v827
      %v836 = vmul.f32 %v828, %v828
      %v837 = vmul.f32 %v829, %v829
      %v838 = vmul.f32 %v830, %v830
      %v839 = vmul.f32 %v831, %v831
      %v840 = vsel %vm658, %v832, 0.0
      %841 = vadd.xlane.f32.xlu0 %v840
      %v842 = vpop.xlane.xlu0 %841
      %v843 = vsel %vm658, %v833, 0.0
      %844 = vadd.xlane.f32.xlu0 %v843
      %v845 = vpop.xlane.xlu0 %844
      %v846 = vsel %vm658, %v834, 0.0
      %847 = vadd.xlane.f32.xlu0 %v846
      %v848 = vpop.xlane.xlu0 %847
      %v849 = vsel %vm658, %v835, 0.0
      %850 = vadd.xlane.f32.xlu0 %v849
      %v851 = vpop.xlane.xlu0 %850
      %v852 = vsel %vm658, %v836, 0.0
      %853 = vadd.xlane.f32.xlu0 %v852
      %v854 = vpop.xlane.xlu0 %853
      %v855 = vsel %vm658, %v837, 0.0
      %856 = vadd.xlane.f32.xlu0 %v855
      %v857 = vpop.xlane.xlu0 %856
      %v858 = vsel %vm658, %v838, 0.0
      %859 = vadd.xlane.f32.xlu0 %v858
      %v860 = vpop.xlane.xlu0 %859
      %v861 = vsel %vm658, %v839, 0.0
      %862 = vadd.xlane.f32.xlu0 %v861
      %v863 = vpop.xlane.xlu0 %862
      %v864 = vmul.f32 %v842, %v683
      %v865 = vmul.f32 %v845, %v683
      %v866 = vmul.f32 %v848, %v683
      %v867 = vmul.f32 %v851, %v683
      %v868 = vmul.f32 %v854, %v683
      %v869 = vmul.f32 %v857, %v683
      %v870 = vmul.f32 %v860, %v683
      %v871 = vmul.f32 %v863, %v683
      %v872 = vadd.f32 %v864, 1e-06
      %v873 = vadd.f32 %v865, 1e-06
      %v874 = vadd.f32 %v866, 1e-06
      %v875 = vadd.f32 %v867, 1e-06
      %v876 = vadd.f32 %v868, 1e-06
      %v877 = vadd.f32 %v869, 1e-06
      %v878 = vadd.f32 %v870, 1e-06
      %v879 = vadd.f32 %v871, 1e-06
      %v880 = vrsqrt.pop %v872
      %v881 = vrsqrt.pop %v873
      %v882 = vrsqrt.pop %v874
      %v883 = vrsqrt.pop %v875
      %v884 = vrsqrt.pop %v876
      %v885 = vrsqrt.pop %v877
      %v886 = vrsqrt.pop %v878
      %v887 = vrsqrt.pop %v879
      %v888 = vmul.f32 %v824, %v880
      %v889 = vmul.f32 %v825, %v881
      %v890 = vmul.f32 %v826, %v882
      %v891 = vmul.f32 %v827, %v883
      %v892 = vmul.f32 %v828, %v884
      %v893 = vmul.f32 %v829, %v885
      %v894 = vmul.f32 %v830, %v886
      %v895 = vmul.f32 %v831, %v887
      %v896 = vlaneseq
      %v897 = vshrl.u32 %v896, 7
      %v898 = vsub.s32 0, %v897
      %v899 = vrot.slane %v434, %v898
      %v900 = vmul.f32 %v888, %v899
      %v901 = vmul.f32 %v889, %v899
      %v902 = vmul.f32 %v890, %v899
      %v903 = vmul.f32 %v891, %v899
      %v904 = vmul.f32 %v892, %v899
      %v905 = vmul.f32 %v893, %v899
      %v906 = vmul.f32 %v894, %v899
      %v907 = vmul.f32 %v895, %v899
      %v908 = vlaneseq
      %v909 = vshrl.u32 %v908, 7
      %v910 = vsub.s32 0, %v909
      %v911 = vrot.slane %v435, %v910
      %v912 = vadd.f32 %v900, %v911
      %v913 = vadd.f32 %v901, %v911
      %v914 = vadd.f32 %v902, %v911
      %v915 = vadd.f32 %v903, %v911
      %v916 = vadd.f32 %v904, %v911
      %v917 = vadd.f32 %v905, %v911
      %v918 = vadd.f32 %v906, %v911
      %v919 = vadd.f32 %v907, %v911
      %v920 = vpack.c.bf16 %v913, %v912
      %v921 = vpack.c.bf16 %v915, %v914
      %v922 = vpack.c.bf16 %v917, %v916
      %v923 = vpack.c.bf16 %v919, %v918
      %v924 = vld [vmem:[%s5] sm:$0xf]
      %v925 = vld [vmem:[%s5 + $0x4] sm:$0xf]
      %v926 = vld [vmem:[%s5 + $0x8] sm:$0xf]
      %v927 = vld [vmem:[%s5 + $0xc] sm:$0xf]
      %v928 = vlaneseq
      %v929 = vshrl.u32 %v928, 7
      %v930 = vsub.s32 0, %v929
      %v931 = vrot.slane %v436, %v930
      %v936 = vunpack.c.l.b16 %v924
      %v937 = vunpack.c.l.b16 %v925
      %v938 = vunpack.c.l.b16 %v926
      %v939 = vunpack.c.l.b16 %v927
      %v940 = vpack.c.b16 %v937, %v936
      %v941 = vpack.c.b16 %v939, %v938
      %v945 = vsel %vm658, %v788, 0
      %v948 = vsel %vm658, %v789, 0
      %v951 = vsel %vm658, %v790, 0
      %v954 = vsel %vm658, %v791, 0
      %956 = vmatprep.subr.bf16.mxu0 0
      %957 = vmatpush1.bf16.msra.mxu0 %v940
      %958 = vmatprep.subr.bf16.mxu0 0
      %959 = vmatpush1.bf16.msra.mxu0 %v941
      %960 = vmatprep.subr.bf16.mxu0 0
      %961 = vmatpush1.bf16.msra.mxu0 0
      %962 = vmatprep.subr.bf16.mxu0 0
      %963 = vmatpush1.bf16.msra.mxu0 0
      %964 = vmatprep.subr.bf16.mxu0 0
      %965 = vmatpush1.bf16.msra.mxu0 0
      %966 = vmatprep.subr.bf16.mxu0 0
      %967 = vmatpush1.bf16.msra.mxu0 0
      %968 = vmatprep.subr.bf16.mxu0 0
      %969 = vmatpush1.bf16.msra.mxu0 0
      %970 = vmatprep.subr.bf16.mxu0 0
      %971 = vmatpush1.bf16.msra.mxu0 0
      %972 = vmatprep.subr.bf16.mxu0 0
      %973 = vmatpush1.bf16.msra.mxu0 0
      %974 = vmatprep.subr.bf16.mxu0 0
      %975 = vmatpush1.bf16.msra.mxu0 0
      %976 = vmatprep.subr.bf16.mxu0 0
      %977 = vmatpush1.bf16.msra.mxu0 0
      %978 = vmatprep.subr.bf16.mxu0 0
      %979 = vmatpush1.bf16.msra.mxu0 0
      %980 = vmatprep.subr.bf16.mxu0 0
      %981 = vmatpush1.bf16.msra.mxu0 0
      %982 = vmatprep.subr.bf16.mxu0 0
      %983 = vmatpush1.bf16.msra.mxu0 0
      %984 = vmatprep.subr.bf16.mxu0 0
      %985 = vmatpush1.bf16.msra.mxu0 0
      %986 = vmatprep.subr.bf16.mxu0 0
      %987 = vmatpush1.bf16.msra.mxu0 0
      %988 = vmatprep.mubr.bf16.mxu0 0
      %989 = vmatmul.mubr.bf16.gmra.mrb[0].mxu0 %v945
      %v990 = vpop.f32.mrb[0].mxu0
      %v991 = vadd.f32 %v931, %v990
      %v992 = vpop.f32.mrb[0].mxu0
      %v993 = vpop.f32.mrb[0].mxu0
      %v994 = vadd.f32 %v931, %v993
      %v995 = vpop.f32.mrb[0].mxu0
      %996 = vmatprep.mubr.bf16.mxu0 0
      %997 = vmatmul.mubr.bf16.gmra.mrb[0].mxu0 %v948
      %v998 = vpop.f32.mrb[0].mxu0
      %v999 = vadd.f32 %v931, %v998
      %v1000 = vpop.f32.mrb[0].mxu0
      %v1001 = vpop.f32.mrb[0].mxu0
      %v1002 = vadd.f32 %v931, %v1001
      %v1003 = vpop.f32.mrb[0].mxu0
      %1004 = vmatprep.mubr.bf16.mxu0 0
      %1005 = vmatmul.mubr.bf16.gmra.mrb[0].mxu0 %v951
      %v1006 = vpop.f32.mrb[0].mxu0
      %v1007 = vadd.f32 %v931, %v1006
      %v1008 = vpop.f32.mrb[0].mxu0
      %v1009 = vpop.f32.mrb[0].mxu0
      %v1010 = vadd.f32 %v931, %v1009
      %v1011 = vpop.f32.mrb[0].mxu0
      %1012 = vmatprep.mubr.bf16.mxu0 0
      %1013 = vmatmul.mubr.bf16.gmra.mrb[0].mxu0 %v954
      %v1014 = vpop.f32.mrb[0].mxu0
      %v1015 = vadd.f32 %v931, %v1014
      %v1016 = vpop.f32.mrb[0].mxu0
      %v1017 = vpop.f32.mrb[0].mxu0
      %v1018 = vadd.f32 %v931, %v1017
      %v1019 = vpop.f32.mrb[0].mxu0
      %1020 = vdwg.mxu0
      %v1021 = vld [vmem:[%s6] sm:$0xf]
      %v1022 = vld [vmem:[%s6 + $0x4] sm:$0xf]
      %v1023 = vld [vmem:[%s6 + $0x8] sm:$0xf]
      %v1024 = vld [vmem:[%s6 + $0xc] sm:$0xf]
      %v1025 = vlaneseq
      %v1026 = vshrl.u32 %v1025, 7
      %v1027 = vsub.s32 0, %v1026
      %v1028 = vrot.slane %v437, %v1027
      %v1033 = vunpack.c.l.b16 %v1021
      %v1034 = vunpack.c.l.b16 %v1022
      %v1035 = vunpack.c.l.b16 %v1023
      %v1036 = vunpack.c.l.b16 %v1024
      %v1037 = vpack.c.b16 %v1034, %v1033
      %v1038 = vpack.c.b16 %v1036, %v1035
      %v1042 = vsel %vm658, %v920, 0
      %v1045 = vsel %vm658, %v921, 0
      %v1048 = vsel %vm658, %v922, 0
      %v1051 = vsel %vm658, %v923, 0
      %1053 = vmatprep.subr.bf16.mxu0 0
      %1054 = vmatpush1.bf16.msra.mxu0 %v1037
      %1055 = vmatprep.subr.bf16.mxu0 0
      %1056 = vmatpush1.bf16.msra.mxu0 %v1038
      %1057 = vmatprep.subr.bf16.mxu0 0
      %1058 = vmatpush1.bf16.msra.mxu0 0
      %1059 = vmatprep.subr.bf16.mxu0 0
      %1060 = vmatpush1.bf16.msra.mxu0 0
      %1061 = vmatprep.subr.bf16.mxu0 0
      %1062 = vmatpush1.bf16.msra.mxu0 0
      %1063 = vmatprep.subr.bf16.mxu0 0
      %1064 = vmatpush1.bf16.msra.mxu0 0
      %1065 = vmatprep.subr.bf16.mxu0 0
      %1066 = vmatpush1.bf16.msra.mxu0 0
      %1067 = vmatprep.subr.bf16.mxu0 0
      %1068 = vmatpush1.bf16.msra.mxu0 0
      %1069 = vmatprep.subr.bf16.mxu0 0
      %1070 = vmatpush1.bf16.msra.mxu0 0
      %1071 = vmatprep.subr.bf16.mxu0 0
      %1072 = vmatpush1.bf16.msra.mxu0 0
      %1073 = vmatprep.subr.bf16.mxu0 0
      %1074 = vmatpush1.bf16.msra.mxu0 0
      %1075 = vmatprep.subr.bf16.mxu0 0
      %1076 = vmatpush1.bf16.msra.mxu0 0
      %1077 = vmatprep.subr.bf16.mxu0 0
      %1078 = vmatpush1.bf16.msra.mxu0 0
      %1079 = vmatprep.subr.bf16.mxu0 0
      %1080 = vmatpush1.bf16.msra.mxu0 0
      %1081 = vmatprep.subr.bf16.mxu0 0
      %1082 = vmatpush1.bf16.msra.mxu0 0
      %1083 = vmatprep.subr.bf16.mxu0 0
      %1084 = vmatpush1.bf16.msra.mxu0 0
      %1085 = vmatprep.mubr.bf16.mxu0 0
      %1086 = vmatmul.mubr.bf16.gmra.mrb[0].mxu0 %v1042
      %v1087 = vpop.f32.mrb[0].mxu0
      %v1088 = vadd.f32 %v1028, %v1087
      %v1089 = vpop.f32.mrb[0].mxu0
      %v1090 = vpop.f32.mrb[0].mxu0
      %v1091 = vadd.f32 %v1028, %v1090
      %v1092 = vpop.f32.mrb[0].mxu0
      %1093 = vmatprep.mubr.bf16.mxu0 0
      %1094 = vmatmul.mubr.bf16.gmra.mrb[0].mxu0 %v1045
      %v1095 = vpop.f32.mrb[0].mxu0
      %v1096 = vadd.f32 %v1028, %v1095
      %v1097 = vpop.f32.mrb[0].mxu0
      %v1098 = vpop.f32.mrb[0].mxu0
      %v1099 = vadd.f32 %v1028, %v1098
      %v1100 = vpop.f32.mrb[0].mxu0
      %1101 = vmatprep.mubr.bf16.mxu0 0
      %1102 = vmatmul.mubr.bf16.gmra.mrb[0].mxu0 %v1048
      %v1103 = vpop.f32.mrb[0].mxu0
      %v1104 = vadd.f32 %v1028, %v1103
      %v1105 = vpop.f32.mrb[0].mxu0
      %v1106 = vpop.f32.mrb[0].mxu0
      %v1107 = vadd.f32 %v1028, %v1106
      %v1108 = vpop.f32.mrb[0].mxu0
      %1109 = vmatprep.mubr.bf16.mxu0 0
      %1110 = vmatmul.mubr.bf16.gmra.mrb[0].mxu0 %v1051
      %v1111 = vpop.f32.mrb[0].mxu0
      %v1112 = vadd.f32 %v1028, %v1111
      %v1113 = vpop.f32.mrb[0].mxu0
      %v1114 = vpop.f32.mrb[0].mxu0
      %v1115 = vadd.f32 %v1028, %v1114
      %v1116 = vpop.f32.mrb[0].mxu0
      %1117 = vdwg.mxu0
      %v1118 = vpack.c.bf16 %v994, %v991
      %v1119 = vpack.c.bf16 %v1002, %v999
      %v1120 = vpack.c.bf16 %v1010, %v1007
      %v1121 = vpack.c.bf16 %v1018, %v1015
      %v1122 = vpack.c.bf16 %v1091, %v1088
      %v1123 = vpack.c.bf16 %v1099, %v1096
      %v1124 = vpack.c.bf16 %v1107, %v1104
      %v1125 = vpack.c.bf16 %v1115, %v1112
      %v1127 = vsel %vm658, %v1118, 0
      %v1130 = vsel %vm658, %v1122, 0
      %1132 = vmatprep.subr.bf16.mxu0 0
      %1133 = vmatpush1.bf16.xpose.msra.mxu0 %v1130
      %1134 = vmatprep.subr.bf16.mxu0 0
      %1135 = vmatpush1.bf16.xpose.msra.mxu0 0
      %1136 = vmatprep.subr.bf16.mxu0 0
      %1137 = vmatpush1.bf16.xpose.msra.mxu0 0
      %1138 = vmatprep.subr.bf16.mxu0 0
      %1139 = vmatpush1.bf16.xpose.msra.mxu0 0
      %1140 = vmatprep.subr.bf16.mxu0 0
      %1141 = vmatpush1.bf16.xpose.msra.mxu0 0
      %1142 = vmatprep.subr.bf16.mxu0 0
      %1143 = vmatpush1.bf16.xpose.msra.mxu0 0
      %1144 = vmatprep.subr.bf16.mxu0 0
      %1145 = vmatpush1.bf16.xpose.msra.mxu0 0
      %1146 = vmatprep.subr.bf16.mxu0 0
      %1147 = vmatpush1.bf16.xpose.msra.mxu0 0
      %1148 = vmatprep.subr.bf16.mxu0 0
      %1149 = vmatpush1.bf16.xpose.msra.mxu0 0
      %1150 = vmatprep.subr.bf16.mxu0 0
      %1151 = vmatpush1.bf16.xpose.msra.mxu0 0
      %1152 = vmatprep.subr.bf16.mxu0 0
      %1153 = vmatpush1.bf16.xpose.msra.mxu0 0
      %1154 = vmatprep.subr.bf16.mxu0 0
      %1155 = vmatpush1.bf16.xpose.msra.mxu0 0
      %1156 = vmatprep.subr.bf16.mxu0 0
      %1157 = vmatpush1.bf16.xpose.msra.mxu0 0
      %1158 = vmatprep.subr.bf16.mxu0 0
      %1159 = vmatpush1.bf16.xpose.msra.mxu0 0
      %1160 = vmatprep.subr.bf16.mxu0 0
      %1161 = vmatpush1.bf16.xpose.msra.mxu0 0
      %1162 = vmatprep.subr.bf16.mxu0 0
      %1163 = vmatpush1.bf16.xpose.msra.mxu0 0
      %1164 = vmatprep.mubr.bf16.mxu0 0
      %1165 = vmatmul.mubr.bf16.gmra.mrb[0].mxu0 %v1127
      %v1166 = vpop.f32.mrb[0].mxu0
      %v1167 = vadd.f32 0.0, %v1166
      %v1168 = vpop.f32.mrb[0].mxu0
      %v1169 = vpop.f32.mrb[0].mxu0
      %v1170 = vadd.f32 0.0, %v1169
      %v1171 = vpop.f32.mrb[0].mxu0
      %1172 = vdwg.mxu0
      %v1174 = vsel %vm658, %v1119, 0
      %v1177 = vsel %vm658, %v1123, 0
      %1179 = vmatprep.subr.bf16.mxu0 0
      %1180 = vmatpush1.bf16.xpose.msra.mxu0 %v1177
      %1181 = vmatprep.subr.bf16.mxu0 0
      %1182 = vmatpush1.bf16.xpose.msra.mxu0 0
      %1183 = vmatprep.subr.bf16.mxu0 0
      %1184 = vmatpush1.bf16.xpose.msra.mxu0 0
      %1185 = vmatprep.subr.bf16.mxu0 0
      %1186 = vmatpush1.bf16.xpose.msra.mxu0 0
      %1187 = vmatprep.subr.bf16.mxu0 0
      %1188 = vmatpush1.bf16.xpose.msra.mxu0 0
      %1189 = vmatprep.subr.bf16.mxu0 0
      %1190 = vmatpush1.bf16.xpose.msra.mxu0 0
      %1191 = vmatprep.subr.bf16.mxu0 0
      %1192 = vmatpush1.bf16.xpose.msra.mxu0 0
      %1193 = vmatprep.subr.bf16.mxu0 0
      %1194 = vmatpush1.bf16.xpose.msra.mxu0 0
      %1195 = vmatprep.subr.bf16.mxu0 0
      %1196 = vmatpush1.bf16.xpose.msra.mxu0 0
      %1197 = vmatprep.subr.bf16.mxu0 0
      %1198 = vmatpush1.bf16.xpose.msra.mxu0 0
      %1199 = vmatprep.subr.bf16.mxu0 0
      %1200 = vmatpush1.bf16.xpose.msra.mxu0 0
      %1201 = vmatprep.subr.bf16.mxu0 0
      %1202 = vmatpush1.bf16.xpose.msra.mxu0 0
      %1203 = vmatprep.subr.bf16.mxu0 0
      %1204 = vmatpush1.bf16.xpose.msra.mxu0 0
      %1205 = vmatprep.subr.bf16.mxu0 0
      %1206 = vmatpush1.bf16.xpose.msra.mxu0 0
      %1207 = vmatprep.subr.bf16.mxu0 0
      %1208 = vmatpush1.bf16.xpose.msra.mxu0 0
      %1209 = vmatprep.subr.bf16.mxu0 0
      %1210 = vmatpush1.bf16.xpose.msra.mxu0 0
      %1211 = vmatprep.mubr.bf16.mxu0 0
      %1212 = vmatmul.mubr.bf16.gmra.mrb[0].mxu0 %v1174
      %v1213 = vpop.f32.mrb[0].mxu0
      %v1214 = vadd.f32 0.0, %v1213
      %v1215 = vpop.f32.mrb[0].mxu0
      %v1216 = vpop.f32.mrb[0].mxu0
      %v1217 = vadd.f32 0.0, %v1216
      %v1218 = vpop.f32.mrb[0].mxu0
      %1219 = vdwg.mxu0
      %v1221 = vsel %vm658, %v1120, 0
      %v1224 = vsel %vm658, %v1124, 0
      %1226 = vmatprep.subr.bf16.mxu0 0
      %1227 = vmatpush1.bf16.xpose.msra.mxu0 %v1224
      %1228 = vmatprep.subr.bf16.mxu0 0
      %1229 = vmatpush1.bf16.xpose.msra.mxu0 0
      %1230 = vmatprep.subr.bf16.mxu0 0
      %1231 = vmatpush1.bf16.xpose.msra.mxu0 0
      %1232 = vmatprep.subr.bf16.mxu0 0
      %1233 = vmatpush1.bf16.xpose.msra.mxu0 0
      %1234 = vmatprep.subr.bf16.mxu0 0
      %1235 = vmatpush1.bf16.xpose.msra.mxu0 0
      %1236 = vmatprep.subr.bf16.mxu0 0
      %1237 = vmatpush1.bf16.xpose.msra.mxu0 0
      %1238 = vmatprep.subr.bf16.mxu0 0
      %1239 = vmatpush1.bf16.xpose.msra.mxu0 0
      %1240 = vmatprep.subr.bf16.mxu0 0
      %1241 = vmatpush1.bf16.xpose.msra.mxu0 0
      %1242 = vmatprep.subr.bf16.mxu0 0
      %1243 = vmatpush1.bf16.xpose.msra.mxu0 0
      %1244 = vmatprep.subr.bf16.mxu0 0
      %1245 = vmatpush1.bf16.xpose.msra.mxu0 0
      %1246 = vmatprep.subr.bf16.mxu0 0
      %1247 = vmatpush1.bf16.xpose.msra.mxu0 0
      %1248 = vmatprep.subr.bf16.mxu0 0
      %1249 = vmatpush1.bf16.xpose.msra.mxu0 0
      %1250 = vmatprep.subr.bf16.mxu0 0
      %1251 = vmatpush1.bf16.xpose.msra.mxu0 0
      %1252 = vmatprep.subr.bf16.mxu0 0
      %1253 = vmatpush1.bf16.xpose.msra.mxu0 0
      %1254 = vmatprep.subr.bf16.mxu0 0
      %1255 = vmatpush1.bf16.xpose.msra.mxu0 0
      %1256 = vmatprep.subr.bf16.mxu0 0
      %1257 = vmatpush1.bf16.xpose.msra.mxu0 0
      %1258 = vmatprep.mubr.bf16.mxu0 0
      %1259 = vmatmul.mubr.bf16.gmra.mrb[0].mxu0 %v1221
      %v1260 = vpop.f32.mrb[0].mxu0
      %v1261 = vadd.f32 0.0, %v1260
      %v1262 = vpop.f32.mrb[0].mxu0
      %v1263 = vpop.f32.mrb[0].mxu0
      %v1264 = vadd.f32 0.0, %v1263
      %v1265 = vpop.f32.mrb[0].mxu0
      %1266 = vdwg.mxu0
      %v1268 = vsel %vm658, %v1121, 0
      %v1271 = vsel %vm658, %v1125, 0
      %1273 = vmatprep.subr.bf16.mxu0 0
      %1274 = vmatpush1.bf16.xpose.msra.mxu0 %v1271
      %1275 = vmatprep.subr.bf16.mxu0 0
      %1276 = vmatpush1.bf16.xpose.msra.mxu0 0
      %1277 = vmatprep.subr.bf16.mxu0 0
      %1278 = vmatpush1.bf16.xpose.msra.mxu0 0
      %1279 = vmatprep.subr.bf16.mxu0 0
      %1280 = vmatpush1.bf16.xpose.msra.mxu0 0
      %1281 = vmatprep.subr.bf16.mxu0 0
      %1282 = vmatpush1.bf16.xpose.msra.mxu0 0
      %1283 = vmatprep.subr.bf16.mxu0 0
      %1284 = vmatpush1.bf16.xpose.msra.mxu0 0
      %1285 = vmatprep.subr.bf16.mxu0 0
      %1286 = vmatpush1.bf16.xpose.msra.mxu0 0
      %1287 = vmatprep.subr.bf16.mxu0 0
      %1288 = vmatpush1.bf16.xpose.msra.mxu0 0
      %1289 = vmatprep.subr.bf16.mxu0 0
      %1290 = vmatpush1.bf16.xpose.msra.mxu0 0
      %1291 = vmatprep.subr.bf16.mxu0 0
      %1292 = vmatpush1.bf16.xpose.msra.mxu0 0
      %1293 = vmatprep.subr.bf16.mxu0 0
      %1294 = vmatpush1.bf16.xpose.msra.mxu0 0
      %1295 = vmatprep.subr.bf16.mxu0 0
      %1296 = vmatpush1.bf16.xpose.msra.mxu0 0
      %1297 = vmatprep.subr.bf16.mxu0 0
      %1298 = vmatpush1.bf16.xpose.msra.mxu0 0
      %1299 = vmatprep.subr.bf16.mxu0 0
      %1300 = vmatpush1.bf16.xpose.msra.mxu0 0
      %1301 = vmatprep.subr.bf16.mxu0 0
      %1302 = vmatpush1.bf16.xpose.msra.mxu0 0
      %1303 = vmatprep.subr.bf16.mxu0 0
      %1304 = vmatpush1.bf16.xpose.msra.mxu0 0
      %1305 = vmatprep.mubr.bf16.mxu0 0
      %1306 = vmatmul.mubr.bf16.gmra.mrb[0].mxu0 %v1268
      %v1307 = vpop.f32.mrb[0].mxu0
      %v1308 = vadd.f32 0.0, %v1307
      %v1309 = vpop.f32.mrb[0].mxu0
      %v1310 = vpop.f32.mrb[0].mxu0
      %v1311 = vadd.f32 0.0, %v1310
      %v1312 = vpop.f32.mrb[0].mxu0
      %1313 = vdwg.mxu0
      %vm1314 = vcmask 130048
      %v1315 = vsel %vm1314, %v1167, -inf
      %1316 = vmax.xlane.f32.xlu0 %v1315
      %v1317 = vpop.xlane.xlu0 %1316
      %v1318 = vsel %vm1314, %v1170, -inf
      %1319 = vmax.xlane.f32.xlu0 %v1318
      %v1320 = vpop.xlane.xlu0 %1319
      %v1321 = vsel %vm1314, %v1214, -inf
      %1322 = vmax.xlane.f32.xlu0 %v1321
      %v1323 = vpop.xlane.xlu0 %1322
      %v1324 = vsel %vm1314, %v1217, -inf
      %1325 = vmax.xlane.f32.xlu0 %v1324
      %v1326 = vpop.xlane.xlu0 %1325
      %v1327 = vsel %vm1314, %v1261, -inf
      %1328 = vmax.xlane.f32.xlu0 %v1327
      %v1329 = vpop.xlane.xlu0 %1328
      %v1330 = vsel %vm1314, %v1264, -inf
      %1331 = vmax.xlane.f32.xlu0 %v1330
      %v1332 = vpop.xlane.xlu0 %1331
      %v1333 = vsel %vm1314, %v1308, -inf
      %1334 = vmax.xlane.f32.xlu0 %v1333
      %v1335 = vpop.xlane.xlu0 %1334
      %v1336 = vsel %vm1314, %v1311, -inf
      %1337 = vmax.xlane.f32.xlu0 %v1336
      %v1338 = vpop.xlane.xlu0 %1337
      %v1339 = vsub.f32 %v1167, %v1317
      %v1340 = vsub.f32 %v1170, %v1320
      %v1341 = vsub.f32 %v1214, %v1323
      %v1342 = vsub.f32 %v1217, %v1326
      %v1343 = vsub.f32 %v1261, %v1329
      %v1344 = vsub.f32 %v1264, %v1332
      %v1345 = vsub.f32 %v1308, %v1335
      %v1346 = vsub.f32 %v1311, %v1338
      %v1347 = vmul.f32 %v1339, 1.442695
      %v1348 = vpow.pop %v1347
      %v1349 = vmul.f32 %v1340, 1.442695
      %v1350 = vpow.pop %v1349
      %v1351 = vmul.f32 %v1341, 1.442695
      %v1352 = vpow.pop %v1351
      %v1353 = vmul.f32 %v1342, 1.442695
      %v1354 = vpow.pop %v1353
      %v1355 = vmul.f32 %v1343, 1.442695
      %v1356 = vpow.pop %v1355
      %v1357 = vmul.f32 %v1344, 1.442695
      %v1358 = vpow.pop %v1357
      %v1359 = vmul.f32 %v1345, 1.442695
      %v1360 = vpow.pop %v1359
      %v1361 = vmul.f32 %v1346, 1.442695
      %v1362 = vpow.pop %v1361
      %v1363 = vsel %vm1314, %v1348, 0.0
      %1364 = vadd.xlane.f32.xlu0 %v1363
      %v1365 = vpop.xlane.xlu0 %1364
      %v1366 = vsel %vm1314, %v1350, 0.0
      %1367 = vadd.xlane.f32.xlu0 %v1366
      %v1368 = vpop.xlane.xlu0 %1367
      %v1369 = vsel %vm1314, %v1352, 0.0
      %1370 = vadd.xlane.f32.xlu0 %v1369
      %v1371 = vpop.xlane.xlu0 %1370
      %v1372 = vsel %vm1314, %v1354, 0.0
      %1373 = vadd.xlane.f32.xlu0 %v1372
      %v1374 = vpop.xlane.xlu0 %1373
      %v1375 = vsel %vm1314, %v1356, 0.0
      %1376 = vadd.xlane.f32.xlu0 %v1375
      %v1377 = vpop.xlane.xlu0 %1376
      %v1378 = vsel %vm1314, %v1358, 0.0
      %1379 = vadd.xlane.f32.xlu0 %v1378
      %v1380 = vpop.xlane.xlu0 %1379
      %v1381 = vsel %vm1314, %v1360, 0.0
      %1382 = vadd.xlane.f32.xlu0 %v1381
      %v1383 = vpop.xlane.xlu0 %1382
      %v1384 = vsel %vm1314, %v1362, 0.0
      %1385 = vadd.xlane.f32.xlu0 %v1384
      %v1386 = vpop.xlane.xlu0 %1385
      %v1387 = vrcp.pop %v1365
      %v1388 = vrcp.pop %v1368
      %v1389 = vrcp.pop %v1371
      %v1390 = vrcp.pop %v1374
      %v1391 = vrcp.pop %v1377
      %v1392 = vrcp.pop %v1380
      %v1393 = vrcp.pop %v1383
      %v1394 = vrcp.pop %v1386
      %v1395 = vmul.f32 %v1348, %v1387
      %v1396 = vmul.f32 %v1350, %v1388
      %v1397 = vmul.f32 %v1352, %v1389
      %v1398 = vmul.f32 %v1354, %v1390
      %v1399 = vmul.f32 %v1356, %v1391
      %v1400 = vmul.f32 %v1358, %v1392
      %v1401 = vmul.f32 %v1360, %v1393
      %v1402 = vmul.f32 %v1362, %v1394
      %v1403 = vmax.f32 %v1315, %v1318
      %v1404 = vrot.slane %v1403, 4
      %v1405 = vmax.f32 %v1403, %v1404
      %v1406 = vrot.slane %v1405, 2
      %v1407 = vmax.f32 %v1405, %v1406
      %v1408 = vrot.slane %v1407, 1
      %v1409 = vmax.f32 %v1407, %v1408
      %v1410 = vmax.f32 %v1321, %v1324
      %v1411 = vrot.slane %v1410, 4
      %v1412 = vmax.f32 %v1410, %v1411
      %v1413 = vrot.slane %v1412, 2
      %v1414 = vmax.f32 %v1412, %v1413
      %v1415 = vrot.slane %v1414, 1
      %v1416 = vmax.f32 %v1414, %v1415
      %v1417 = vmax.f32 %v1327, %v1330
      %v1418 = vrot.slane %v1417, 4
      %v1419 = vmax.f32 %v1417, %v1418
      %v1420 = vrot.slane %v1419, 2
      %v1421 = vmax.f32 %v1419, %v1420
      %v1422 = vrot.slane %v1421, 1
      %v1423 = vmax.f32 %v1421, %v1422
      %v1424 = vmax.f32 %v1333, %v1336
      %v1425 = vrot.slane %v1424, 4
      %v1426 = vmax.f32 %v1424, %v1425
      %v1427 = vrot.slane %v1426, 2
      %v1428 = vmax.f32 %v1426, %v1427
      %v1429 = vrot.slane %v1428, 1
      %v1430 = vmax.f32 %v1428, %v1429
      %v1431 = vsub.f32 %v1167, %v1409
      %v1432 = vsub.f32 %v1170, %v1409
      %v1433 = vsub.f32 %v1214, %v1416
      %v1434 = vsub.f32 %v1217, %v1416
      %v1435 = vsub.f32 %v1261, %v1423
      %v1436 = vsub.f32 %v1264, %v1423
      %v1437 = vsub.f32 %v1308, %v1430
      %v1438 = vsub.f32 %v1311, %v1430
      %v1439 = vmul.f32 %v1431, 1.442695
      %v1440 = vpow.pop %v1439
      %v1441 = vmul.f32 %v1432, 1.442695
      %v1442 = vpow.pop %v1441
      %v1443 = vmul.f32 %v1433, 1.442695
      %v1444 = vpow.pop %v1443
      %v1445 = vmul.f32 %v1434, 1.442695
      %v1446 = vpow.pop %v1445
      %v1447 = vmul.f32 %v1435, 1.442695
      %v1448 = vpow.pop %v1447
      %v1449 = vmul.f32 %v1436, 1.442695
      %v1450 = vpow.pop %v1449
      %v1451 = vmul.f32 %v1437, 1.442695
      %v1452 = vpow.pop %v1451
      %v1453 = vmul.f32 %v1438, 1.442695
      %v1454 = vpow.pop %v1453
      %v1455 = vsel %vm1314, %v1440, 0.0
      %v1456 = vsel %vm1314, %v1442, 0.0
      %v1457 = vadd.f32 %v1455, %v1456
      %v1458 = vrot.slane %v1457, 4
      %v1459 = vadd.f32 %v1457, %v1458
      %v1460 = vrot.slane %v1459, 2
      %v1461 = vadd.f32 %v1459, %v1460
      %v1462 = vrot.slane %v1461, 1
      %v1463 = vadd.f32 %v1461, %v1462
      %v1464 = vsel %vm1314, %v1444, 0.0
      %v1465 = vsel %vm1314, %v1446, 0.0
      %v1466 = vadd.f32 %v1464, %v1465
      %v1467 = vrot.slane %v1466, 4
      %v1468 = vadd.f32 %v1466, %v1467
      %v1469 = vrot.slane %v1468, 2
      %v1470 = vadd.f32 %v1468, %v1469
      %v1471 = vrot.slane %v1470, 1
      %v1472 = vadd.f32 %v1470, %v1471
      %v1473 = vsel %vm1314, %v1448, 0.0
      %v1474 = vsel %vm1314, %v1450, 0.0
      %v1475 = vadd.f32 %v1473, %v1474
      %v1476 = vrot.slane %v1475, 4
      %v1477 = vadd.f32 %v1475, %v1476
      %v1478 = vrot.slane %v1477, 2
      %v1479 = vadd.f32 %v1477, %v1478
      %v1480 = vrot.slane %v1479, 1
      %v1481 = vadd.f32 %v1479, %v1480
      %v1482 = vsel %vm1314, %v1452, 0.0
      %v1483 = vsel %vm1314, %v1454, 0.0
      %v1484 = vadd.f32 %v1482, %v1483
      %v1485 = vrot.slane %v1484, 4
      %v1486 = vadd.f32 %v1484, %v1485
      %v1487 = vrot.slane %v1486, 2
      %v1488 = vadd.f32 %v1486, %v1487
      %v1489 = vrot.slane %v1488, 1
      %v1490 = vadd.f32 %v1488, %v1489
      %v1491 = vrcp.pop %v1463
      %v1492 = vrcp.pop %v1472
      %v1493 = vrcp.pop %v1481
      %v1494 = vrcp.pop %v1490
      %v1495 = vmul.f32 %v1440, %v1491
      %v1496 = vmul.f32 %v1442, %v1491
      %v1497 = vmul.f32 %v1444, %v1492
      %v1498 = vmul.f32 %v1446, %v1492
      %v1499 = vmul.f32 %v1448, %v1493
      %v1500 = vmul.f32 %v1450, %v1493
      %v1501 = vmul.f32 %v1452, %v1494
      %v1502 = vmul.f32 %v1454, %v1494
      %v1503 = vpack.c.bf16 %v443, %v442
      %v1504 = vpack.c.bf16 %v445, %v444
      %v1505 = vpack.c.bf16 %v447, %v446
      %v1506 = vpack.c.bf16 %v449, %v448
      %v1507 = vld [vmem:[%s7] sm:$0xf]
      %v1508 = vld [vmem:[%s7 + $0x4] sm:$0xf]
      %v1509 = vld [vmem:[%s7 + $0x8] sm:$0xf]
      %v1510 = vld [vmem:[%s7 + $0xc] sm:$0xf]
      %v1511 = vld [vmem:[%s7 + $0x10] sm:$0xf]
      %v1512 = vld [vmem:[%s7 + $0x14] sm:$0xf]
      %v1513 = vld [vmem:[%s7 + $0x18] sm:$0xf]
      %v1514 = vld [vmem:[%s7 + $0x1c] sm:$0xf]
      %v1515 = vld [vmem:[%s7 + $0x20] sm:$0xf]
      %v1516 = vld [vmem:[%s7 + $0x24] sm:$0xf]
      %v1517 = vld [vmem:[%s7 + $0x28] sm:$0xf]
      %v1518 = vld [vmem:[%s7 + $0x2c] sm:$0xf]
      %v1519 = vlaneseq
      %v1520 = vshrl.u32 %v1519, 7
      %v1521 = vsub.s32 0, %v1520
      %v1522 = vrot.slane %v438, %v1521
      %v1535 = vunpack.c.l.b16 %v1507
      %v1536 = vunpack.c.l.b16 %v1508
      %v1537 = vunpack.c.l.b16 %v1509
      %v1538 = vunpack.c.l.b16 %v1510
      %v1539 = vunpack.c.l.b16 %v1511
      %v1540 = vunpack.c.l.b16 %v1512
      %v1541 = vunpack.c.l.b16 %v1513
      %v1542 = vunpack.c.l.b16 %v1514
      %v1543 = vunpack.c.l.b16 %v1515
      %v1544 = vunpack.c.l.b16 %v1516
      %v1545 = vunpack.c.l.b16 %v1517
      %v1546 = vunpack.c.l.b16 %v1518
      %v1547 = vpack.c.b16 %v1536, %v1535
      %v1548 = vpack.c.b16 %v1538, %v1537
      %v1549 = vpack.c.b16 %v1540, %v1539
      %v1550 = vpack.c.b16 %v1542, %v1541
      %v1551 = vpack.c.b16 %v1544, %v1543
      %v1552 = vpack.c.b16 %v1546, %v1545
      %vm1559 = vcmask 785408
      %v1561 = vsel %vm1559, %v1503, 0
      %v1564 = vsel %vm1559, %v1504, 0
      %v1567 = vsel %vm1559, %v1505, 0
      %v1570 = vsel %vm1559, %v1506, 0
      %1572 = vmatprep.subr.bf16.mxu0 0
      %1573 = vmatpush1.bf16.msra.mxu0 %v1547
      %1574 = vmatprep.subr.bf16.mxu0 0
      %1575 = vmatpush1.bf16.msra.mxu0 %v1548
      %1576 = vmatprep.subr.bf16.mxu0 0
      %1577 = vmatpush1.bf16.msra.mxu0 %v1549
      %1578 = vmatprep.subr.bf16.mxu0 0
      %1579 = vmatpush1.bf16.msra.mxu0 %v1550
      %1580 = vmatprep.subr.bf16.mxu0 0
      %1581 = vmatpush1.bf16.msra.mxu0 %v1551
      %1582 = vmatprep.subr.bf16.mxu0 0
      %1583 = vmatpush1.bf16.msra.mxu0 %v1552
      %1584 = vmatprep.subr.bf16.mxu0 0
      %1585 = vmatpush1.bf16.msra.mxu0 0
      %1586 = vmatprep.subr.bf16.mxu0 0
      %1587 = vmatpush1.bf16.msra.mxu0 0
      %1588 = vmatprep.subr.bf16.mxu0 0
      %1589 = vmatpush1.bf16.msra.mxu0 0
      %1590 = vmatprep.subr.bf16.mxu0 0
      %1591 = vmatpush1.bf16.msra.mxu0 0
      %1592 = vmatprep.subr.bf16.mxu0 0
      %1593 = vmatpush1.bf16.msra.mxu0 0
      %1594 = vmatprep.subr.bf16.mxu0 0
      %1595 = vmatpush1.bf16.msra.mxu0 0
      %1596 = vmatprep.subr.bf16.mxu0 0
      %1597 = vmatpush1.bf16.msra.mxu0 0
      %1598 = vmatprep.subr.bf16.mxu0 0
      %1599 = vmatpush1.bf16.msra.mxu0 0
      %1600 = vmatprep.subr.bf16.mxu0 0
      %1601 = vmatpush1.bf16.msra.mxu0 0
      %1602 = vmatprep.subr.bf16.mxu0 0
      %1603 = vmatpush1.bf16.msra.mxu0 0
      %1604 = vmatprep.mubr.bf16.mxu0 0
      %1605 = vmatmul.mubr.bf16.gmra.mrb[0].mxu0 %v1561
      %v1606 = vpop.f32.mrb[0].mxu0
      %v1607 = vadd.f32 %v1522, %v1606
      %v1608 = vpop.f32.mrb[0].mxu0
      %v1609 = vpop.f32.mrb[0].mxu0
      %v1610 = vadd.f32 %v1522, %v1609
      %v1611 = vpop.f32.mrb[0].mxu0
      %1612 = vmatprep.mubr.bf16.mxu0 0
      %1613 = vmatmul.mubr.bf16.gmra.mrb[0].mxu0 %v1564
      %v1614 = vpop.f32.mrb[0].mxu0
      %v1615 = vadd.f32 %v1522, %v1614
      %v1616 = vpop.f32.mrb[0].mxu0
      %v1617 = vpop.f32.mrb[0].mxu0
      %v1618 = vadd.f32 %v1522, %v1617
      %v1619 = vpop.f32.mrb[0].mxu0
      %1620 = vmatprep.mubr.bf16.mxu0 0
      %1621 = vmatmul.mubr.bf16.gmra.mrb[0].mxu0 %v1567
      %v1622 = vpop.f32.mrb[0].mxu0
      %v1623 = vadd.f32 %v1522, %v1622
      %v1624 = vpop.f32.mrb[0].mxu0
      %v1625 = vpop.f32.mrb[0].mxu0
      %v1626 = vadd.f32 %v1522, %v1625
      %v1627 = vpop.f32.mrb[0].mxu0
      %1628 = vmatprep.mubr.bf16.mxu0 0
      %1629 = vmatmul.mubr.bf16.gmra.mrb[0].mxu0 %v1570
      %v1630 = vpop.f32.mrb[0].mxu0
      %v1631 = vadd.f32 %v1522, %v1630
      %v1632 = vpop.f32.mrb[0].mxu0
      %v1633 = vpop.f32.mrb[0].mxu0
      %v1634 = vadd.f32 %v1522, %v1633
      %v1635 = vpop.f32.mrb[0].mxu0
      %1636 = vdwg.mxu0
      %v1637 = vpack.c.bf16 %v451, %v450
      %v1638 = vpack.c.bf16 %v453, %v452
      %v1639 = vpack.c.bf16 %v455, %v454
      %v1640 = vpack.c.bf16 %v457, %v456
      %v1641 = vld [vmem:[%s8] sm:$0xf]
      %v1642 = vld [vmem:[%s8 + $0x4] sm:$0xf]
      %v1643 = vld [vmem:[%s8 + $0x8] sm:$0xf]
      %v1644 = vld [vmem:[%s8 + $0xc] sm:$0xf]
      %v1645 = vld [vmem:[%s8 + $0x10] sm:$0xf]
      %v1646 = vld [vmem:[%s8 + $0x14] sm:$0xf]
      %v1647 = vld [vmem:[%s8 + $0x18] sm:$0xf]
      %v1648 = vld [vmem:[%s8 + $0x1c] sm:$0xf]
      %v1649 = vld [vmem:[%s8 + $0x20] sm:$0xf]
      %v1650 = vld [vmem:[%s8 + $0x24] sm:$0xf]
      %v1651 = vld [vmem:[%s8 + $0x28] sm:$0xf]
      %v1652 = vld [vmem:[%s8 + $0x2c] sm:$0xf]
      %v1653 = vlaneseq
      %v1654 = vshrl.u32 %v1653, 7
      %v1655 = vsub.s32 0, %v1654
      %v1656 = vrot.slane %v439, %v1655
      %v1669 = vunpack.c.l.b16 %v1641
      %v1670 = vunpack.c.l.b16 %v1642
      %v1671 = vunpack.c.l.b16 %v1643
      %v1672 = vunpack.c.l.b16 %v1644
      %v1673 = vunpack.c.l.b16 %v1645
      %v1674 = vunpack.c.l.b16 %v1646
      %v1675 = vunpack.c.l.b16 %v1647
      %v1676 = vunpack.c.l.b16 %v1648
      %v1677 = vunpack.c.l.b16 %v1649
      %v1678 = vunpack.c.l.b16 %v1650
      %v1679 = vunpack.c.l.b16 %v1651
      %v1680 = vunpack.c.l.b16 %v1652
      %v1681 = vpack.c.b16 %v1670, %v1669
      %v1682 = vpack.c.b16 %v1672, %v1671
      %v1683 = vpack.c.b16 %v1674, %v1673
      %v1684 = vpack.c.b16 %v1676, %v1675
      %v1685 = vpack.c.b16 %v1678, %v1677
      %v1686 = vpack.c.b16 %v1680, %v1679
      %v1694 = vsel %vm1559, %v1637, 0
      %v1697 = vsel %vm1559, %v1638, 0
      %v1700 = vsel %vm1559, %v1639, 0
      %v1703 = vsel %vm1559, %v1640, 0
      %1705 = vmatprep.subr.bf16.mxu0 0
      %1706 = vmatpush1.bf16.msra.mxu0 %v1681
      %1707 = vmatprep.subr.bf16.mxu0 0
      %1708 = vmatpush1.bf16.msra.mxu0 %v1682
      %1709 = vmatprep.subr.bf16.mxu0 0
      %1710 = vmatpush1.bf16.msra.mxu0 %v1683
      %1711 = vmatprep.subr.bf16.mxu0 0
      %1712 = vmatpush1.bf16.msra.mxu0 %v1684
      %1713 = vmatprep.subr.bf16.mxu0 0
      %1714 = vmatpush1.bf16.msra.mxu0 %v1685
      %1715 = vmatprep.subr.bf16.mxu0 0
      %1716 = vmatpush1.bf16.msra.mxu0 %v1686
      %1717 = vmatprep.subr.bf16.mxu0 0
      %1718 = vmatpush1.bf16.msra.mxu0 0
      %1719 = vmatprep.subr.bf16.mxu0 0
      %1720 = vmatpush1.bf16.msra.mxu0 0
      %1721 = vmatprep.subr.bf16.mxu0 0
      %1722 = vmatpush1.bf16.msra.mxu0 0
      %1723 = vmatprep.subr.bf16.mxu0 0
      %1724 = vmatpush1.bf16.msra.mxu0 0
      %1725 = vmatprep.subr.bf16.mxu0 0
      %1726 = vmatpush1.bf16.msra.mxu0 0
      %1727 = vmatprep.subr.bf16.mxu0 0
      %1728 = vmatpush1.bf16.msra.mxu0 0
      %1729 = vmatprep.subr.bf16.mxu0 0
      %1730 = vmatpush1.bf16.msra.mxu0 0
      %1731 = vmatprep.subr.bf16.mxu0 0
      %1732 = vmatpush1.bf16.msra.mxu0 0
      %1733 = vmatprep.subr.bf16.mxu0 0
      %1734 = vmatpush1.bf16.msra.mxu0 0
      %1735 = vmatprep.subr.bf16.mxu0 0
      %1736 = vmatpush1.bf16.msra.mxu0 0
      %1737 = vmatprep.mubr.bf16.mxu0 0
      %1738 = vmatmul.mubr.bf16.gmra.mrb[0].mxu0 %v1694
      %v1739 = vpop.f32.mrb[0].mxu0
      %v1740 = vadd.f32 %v1656, %v1739
      %v1741 = vpop.f32.mrb[0].mxu0
      %v1742 = vpop.f32.mrb[0].mxu0
      %v1743 = vadd.f32 %v1656, %v1742
      %v1744 = vpop.f32.mrb[0].mxu0
      %1745 = vmatprep.mubr.bf16.mxu0 0
      %1746 = vmatmul.mubr.bf16.gmra.mrb[0].mxu0 %v1697
      %v1747 = vpop.f32.mrb[0].mxu0
      %v1748 = vadd.f32 %v1656, %v1747
      %v1749 = vpop.f32.mrb[0].mxu0
      %v1750 = vpop.f32.mrb[0].mxu0
      %v1751 = vadd.f32 %v1656, %v1750
      %v1752 = vpop.f32.mrb[0].mxu0
      %1753 = vmatprep.mubr.bf16.mxu0 0
      %1754 = vmatmul.mubr.bf16.gmra.mrb[0].mxu0 %v1700
      %v1755 = vpop.f32.mrb[0].mxu0
      %v1756 = vadd.f32 %v1656, %v1755
      %v1757 = vpop.f32.mrb[0].mxu0
      %v1758 = vpop.f32.mrb[0].mxu0
      %v1759 = vadd.f32 %v1656, %v1758
      %v1760 = vpop.f32.mrb[0].mxu0
      %1761 = vmatprep.mubr.bf16.mxu0 0
      %1762 = vmatmul.mubr.bf16.gmra.mrb[0].mxu0 %v1703
      %v1763 = vpop.f32.mrb[0].mxu0
      %v1764 = vadd.f32 %v1656, %v1763
      %v1765 = vpop.f32.mrb[0].mxu0
      %v1766 = vpop.f32.mrb[0].mxu0
      %v1767 = vadd.f32 %v1656, %v1766
      %v1768 = vpop.f32.mrb[0].mxu0
      %1769 = vdwg.mxu0
      %v1770 = vpack.c.bf16 %v1396, %v1395
      %v1771 = vpack.c.bf16 %v1398, %v1397
      %v1772 = vpack.c.bf16 %v1400, %v1399
      %v1773 = vpack.c.bf16 %v1402, %v1401
      %v1774 = vpack.c.bf16 %v1743, %v1740
      %v1775 = vpack.c.bf16 %v1751, %v1748
      %v1776 = vpack.c.bf16 %v1759, %v1756
      %v1777 = vpack.c.bf16 %v1767, %v1764
      %v1779 = vsel %vm1314, %v1770, 0
      %1781 = vmatprep.subr.bf16.mxu0 0
      %1782 = vmatpush1.bf16.msra.mxu0 %v1774
      %1783 = vmatprep.subr.bf16.mxu0 0
      %1784 = vmatpush1.bf16.msra.mxu0 0
      %1785 = vmatprep.subr.bf16.mxu0 0
      %1786 = vmatpush1.bf16.msra.mxu0 0
      %1787 = vmatprep.subr.bf16.mxu0 0
      %1788 = vmatpush1.bf16.msra.mxu0 0
      %1789 = vmatprep.subr.bf16.mxu0 0
      %1790 = vmatpush1.bf16.msra.mxu0 0
      %1791 = vmatprep.subr.bf16.mxu0 0
      %1792 = vmatpush1.bf16.msra.mxu0 0
      %1793 = vmatprep.subr.bf16.mxu0 0
      %1794 = vmatpush1.bf16.msra.mxu0 0
      %1795 = vmatprep.subr.bf16.mxu0 0
      %1796 = vmatpush1.bf16.msra.mxu0 0
      %1797 = vmatprep.subr.bf16.mxu0 0
      %1798 = vmatpush1.bf16.msra.mxu0 0
      %1799 = vmatprep.subr.bf16.mxu0 0
      %1800 = vmatpush1.bf16.msra.mxu0 0
      %1801 = vmatprep.subr.bf16.mxu0 0
      %1802 = vmatpush1.bf16.msra.mxu0 0
      %1803 = vmatprep.subr.bf16.mxu0 0
      %1804 = vmatpush1.bf16.msra.mxu0 0
      %1805 = vmatprep.subr.bf16.mxu0 0
      %1806 = vmatpush1.bf16.msra.mxu0 0
      %1807 = vmatprep.subr.bf16.mxu0 0
      %1808 = vmatpush1.bf16.msra.mxu0 0
      %1809 = vmatprep.subr.bf16.mxu0 0
      %1810 = vmatpush1.bf16.msra.mxu0 0
      %1811 = vmatprep.subr.bf16.mxu0 0
      %1812 = vmatpush1.bf16.msra.mxu0 0
      %1813 = vmatprep.mubr.bf16.mxu0 0
      %1814 = vmatmul.mubr.bf16.gmra.mrb[0].mxu0 %v1779
      %v1815 = vpop.f32.mrb[0].mxu0
      %v1816 = vadd.f32 0.0, %v1815
      %v1817 = vpop.f32.mrb[0].mxu0
      %v1818 = vpop.f32.mrb[0].mxu0
      %v1819 = vadd.f32 0.0, %v1818
      %v1820 = vpop.f32.mrb[0].mxu0
      %1821 = vdwg.mxu0
      %v1823 = vsel %vm1314, %v1771, 0
      %1825 = vmatprep.subr.bf16.mxu0 0
      %1826 = vmatpush1.bf16.msra.mxu0 %v1775
      %1827 = vmatprep.subr.bf16.mxu0 0
      %1828 = vmatpush1.bf16.msra.mxu0 0
      %1829 = vmatprep.subr.bf16.mxu0 0
      %1830 = vmatpush1.bf16.msra.mxu0 0
      %1831 = vmatprep.subr.bf16.mxu0 0
      %1832 = vmatpush1.bf16.msra.mxu0 0
      %1833 = vmatprep.subr.bf16.mxu0 0
      %1834 = vmatpush1.bf16.msra.mxu0 0
      %1835 = vmatprep.subr.bf16.mxu0 0
      %1836 = vmatpush1.bf16.msra.mxu0 0
      %1837 = vmatprep.subr.bf16.mxu0 0
      %1838 = vmatpush1.bf16.msra.mxu0 0
      %1839 = vmatprep.subr.bf16.mxu0 0
      %1840 = vmatpush1.bf16.msra.mxu0 0
      %1841 = vmatprep.subr.bf16.mxu0 0
      %1842 = vmatpush1.bf16.msra.mxu0 0
      %1843 = vmatprep.subr.bf16.mxu0 0
      %1844 = vmatpush1.bf16.msra.mxu0 0
      %1845 = vmatprep.subr.bf16.mxu0 0
      %1846 = vmatpush1.bf16.msra.mxu0 0
      %1847 = vmatprep.subr.bf16.mxu0 0
      %1848 = vmatpush1.bf16.msra.mxu0 0
      %1849 = vmatprep.subr.bf16.mxu0 0
      %1850 = vmatpush1.bf16.msra.mxu0 0
      %1851 = vmatprep.subr.bf16.mxu0 0
      %1852 = vmatpush1.bf16.msra.mxu0 0
      %1853 = vmatprep.subr.bf16.mxu0 0
      %1854 = vmatpush1.bf16.msra.mxu0 0
      %1855 = vmatprep.subr.bf16.mxu0 0
      %1856 = vmatpush1.bf16.msra.mxu0 0
      %1857 = vmatprep.mubr.bf16.mxu0 0
      %1858 = vmatmul.mubr.bf16.gmra.mrb[0].mxu0 %v1823
      %v1859 = vpop.f32.mrb[0].mxu0
      %v1860 = vadd.f32 0.0, %v1859
      %v1861 = vpop.f32.mrb[0].mxu0
      %v1862 = vpop.f32.mrb[0].mxu0
      %v1863 = vadd.f32 0.0, %v1862
      %v1864 = vpop.f32.mrb[0].mxu0
      %1865 = vdwg.mxu0
      %v1867 = vsel %vm1314, %v1772, 0
      %1869 = vmatprep.subr.bf16.mxu0 0
      %1870 = vmatpush1.bf16.msra.mxu0 %v1776
      %1871 = vmatprep.subr.bf16.mxu0 0
      %1872 = vmatpush1.bf16.msra.mxu0 0
      %1873 = vmatprep.subr.bf16.mxu0 0
      %1874 = vmatpush1.bf16.msra.mxu0 0
      %1875 = vmatprep.subr.bf16.mxu0 0
      %1876 = vmatpush1.bf16.msra.mxu0 0
      %1877 = vmatprep.subr.bf16.mxu0 0
      %1878 = vmatpush1.bf16.msra.mxu0 0
      %1879 = vmatprep.subr.bf16.mxu0 0
      %1880 = vmatpush1.bf16.msra.mxu0 0
      %1881 = vmatprep.subr.bf16.mxu0 0
      %1882 = vmatpush1.bf16.msra.mxu0 0
      %1883 = vmatprep.subr.bf16.mxu0 0
      %1884 = vmatpush1.bf16.msra.mxu0 0
      %1885 = vmatprep.subr.bf16.mxu0 0
      %1886 = vmatpush1.bf16.msra.mxu0 0
      %1887 = vmatprep.subr.bf16.mxu0 0
      %1888 = vmatpush1.bf16.msra.mxu0 0
      %1889 = vmatprep.subr.bf16.mxu0 0
      %1890 = vmatpush1.bf16.msra.mxu0 0
      %1891 = vmatprep.subr.bf16.mxu0 0
      %1892 = vmatpush1.bf16.msra.mxu0 0
      %1893 = vmatprep.subr.bf16.mxu0 0
      %1894 = vmatpush1.bf16.msra.mxu0 0
      %1895 = vmatprep.subr.bf16.mxu0 0
      %1896 = vmatpush1.bf16.msra.mxu0 0
      %1897 = vmatprep.subr.bf16.mxu0 0
      %1898 = vmatpush1.bf16.msra.mxu0 0
      %1899 = vmatprep.subr.bf16.mxu0 0
      %1900 = vmatpush1.bf16.msra.mxu0 0
      %1901 = vmatprep.mubr.bf16.mxu0 0
      %1902 = vmatmul.mubr.bf16.gmra.mrb[0].mxu0 %v1867
      %v1903 = vpop.f32.mrb[0].mxu0
      %v1904 = vadd.f32 0.0, %v1903
      %v1905 = vpop.f32.mrb[0].mxu0
      %v1906 = vpop.f32.mrb[0].mxu0
      %v1907 = vadd.f32 0.0, %v1906
      %v1908 = vpop.f32.mrb[0].mxu0
      %1909 = vdwg.mxu0
      %v1911 = vsel %vm1314, %v1773, 0
      %1913 = vmatprep.subr.bf16.mxu0 0
      %1914 = vmatpush1.bf16.msra.mxu0 %v1777
      %1915 = vmatprep.subr.bf16.mxu0 0
      %1916 = vmatpush1.bf16.msra.mxu0 0
      %1917 = vmatprep.subr.bf16.mxu0 0
      %1918 = vmatpush1.bf16.msra.mxu0 0
      %1919 = vmatprep.subr.bf16.mxu0 0
      %1920 = vmatpush1.bf16.msra.mxu0 0
      %1921 = vmatprep.subr.bf16.mxu0 0
      %1922 = vmatpush1.bf16.msra.mxu0 0
      %1923 = vmatprep.subr.bf16.mxu0 0
      %1924 = vmatpush1.bf16.msra.mxu0 0
      %1925 = vmatprep.subr.bf16.mxu0 0
      %1926 = vmatpush1.bf16.msra.mxu0 0
      %1927 = vmatprep.subr.bf16.mxu0 0
      %1928 = vmatpush1.bf16.msra.mxu0 0
      %1929 = vmatprep.subr.bf16.mxu0 0
      %1930 = vmatpush1.bf16.msra.mxu0 0
      %1931 = vmatprep.subr.bf16.mxu0 0
      %1932 = vmatpush1.bf16.msra.mxu0 0
      %1933 = vmatprep.subr.bf16.mxu0 0
      %1934 = vmatpush1.bf16.msra.mxu0 0
      %1935 = vmatprep.subr.bf16.mxu0 0
      %1936 = vmatpush1.bf16.msra.mxu0 0
      %1937 = vmatprep.subr.bf16.mxu0 0
      %1938 = vmatpush1.bf16.msra.mxu0 0
      %1939 = vmatprep.subr.bf16.mxu0 0
      %1940 = vmatpush1.bf16.msra.mxu0 0
      %1941 = vmatprep.subr.bf16.mxu0 0
      %1942 = vmatpush1.bf16.msra.mxu0 0
      %1943 = vmatprep.subr.bf16.mxu0 0
      %1944 = vmatpush1.bf16.msra.mxu0 0
      %1945 = vmatprep.mubr.bf16.mxu0 0
      %1946 = vmatmul.mubr.bf16.gmra.mrb[0].mxu0 %v1911
      %v1947 = vpop.f32.mrb[0].mxu0
      %v1948 = vadd.f32 0.0, %v1947
      %v1949 = vpop.f32.mrb[0].mxu0
      %v1950 = vpop.f32.mrb[0].mxu0
      %v1951 = vadd.f32 0.0, %v1950
      %v1952 = vpop.f32.mrb[0].mxu0
      %1953 = vdwg.mxu0
      %v1954 = vpack.c.bf16 %v1496, %v1495
      %v1955 = vpack.c.bf16 %v1498, %v1497
      %v1956 = vpack.c.bf16 %v1500, %v1499
      %v1957 = vpack.c.bf16 %v1502, %v1501
      %v1958 = vpack.c.bf16 %v1610, %v1607
      %v1959 = vpack.c.bf16 %v1618, %v1615
      %v1960 = vpack.c.bf16 %v1626, %v1623
      %v1961 = vpack.c.bf16 %v1634, %v1631
      %1962 = vxpose.xlu0.c.b16.start [1/8] %v1954, 128
      %1963 = vxpose.xlu0.c.b16.cont [2/8] 0, 128
      %1964 = vxpose.xlu0.c.b16.cont [3/8] 0, 128
      %1965 = vxpose.xlu0.c.b16.cont [4/8] 0, 128
      %1966 = vxpose.xlu0.c.b16.cont [5/8] 0, 128
      %1967 = vxpose.xlu0.c.b16.cont [6/8] 0, 128
      %1968 = vxpose.xlu0.c.b16.cont [7/8] 0, 128
      %1969 = vxpose.xlu0.c.b16.end [8/8] 0, 128
      %v1970 = vpop.trf.xlu0
      %v1971 = vpop.trf.xlu0
      %v1972 = vpop.trf.xlu0
      %v1973 = vpop.trf.xlu0
      %v1974 = vpop.trf.xlu0
      %v1975 = vpop.trf.xlu0
      %v1976 = vpop.trf.xlu0
      %v1977 = vpop.trf.xlu0
      %v1979 = vsel %vm1314, %v1970, 0
      %1981 = vmatprep.subr.bf16.mxu0 0
      %1982 = vmatpush1.bf16.msra.mxu0 %v1958
      %1983 = vmatprep.subr.bf16.mxu0 0
      %1984 = vmatpush1.bf16.msra.mxu0 0
      %1985 = vmatprep.subr.bf16.mxu0 0
      %1986 = vmatpush1.bf16.msra.mxu0 0
      %1987 = vmatprep.subr.bf16.mxu0 0
      %1988 = vmatpush1.bf16.msra.mxu0 0
      %1989 = vmatprep.subr.bf16.mxu0 0
      %1990 = vmatpush1.bf16.msra.mxu0 0
      %1991 = vmatprep.subr.bf16.mxu0 0
      %1992 = vmatpush1.bf16.msra.mxu0 0
      %1993 = vmatprep.subr.bf16.mxu0 0
      %1994 = vmatpush1.bf16.msra.mxu0 0
      %1995 = vmatprep.subr.bf16.mxu0 0
      %1996 = vmatpush1.bf16.msra.mxu0 0
      %1997 = vmatprep.subr.bf16.mxu0 0
      %1998 = vmatpush1.bf16.msra.mxu0 0
      %1999 = vmatprep.subr.bf16.mxu0 0
      %2000 = vmatpush1.bf16.msra.mxu0 0
      %2001 = vmatprep.subr.bf16.mxu0 0
      %2002 = vmatpush1.bf16.msra.mxu0 0
      %2003 = vmatprep.subr.bf16.mxu0 0
      %2004 = vmatpush1.bf16.msra.mxu0 0
      %2005 = vmatprep.subr.bf16.mxu0 0
      %2006 = vmatpush1.bf16.msra.mxu0 0
      %2007 = vmatprep.subr.bf16.mxu0 0
      %2008 = vmatpush1.bf16.msra.mxu0 0
      %2009 = vmatprep.subr.bf16.mxu0 0
      %2010 = vmatpush1.bf16.msra.mxu0 0
      %2011 = vmatprep.subr.bf16.mxu0 0
      %2012 = vmatpush1.bf16.msra.mxu0 0
      %2013 = vmatprep.mubr.bf16.mxu0 0
      %2014 = vmatmul.mubr.bf16.gmra.mrb[0].mxu0 %v1979
      %v2015 = vpop.f32.mrb[0].mxu0
      %v2016 = vadd.f32 0.0, %v2015
      %v2017 = vpop.f32.mrb[0].mxu0
      %v2018 = vpop.f32.mrb[0].mxu0
      %v2019 = vadd.f32 0.0, %v2018
      %v2020 = vpop.f32.mrb[0].mxu0
      %2021 = vdwg.mxu0
      %2022 = vxpose.xlu0.c.b16.start [1/8] %v1955, 128
      %2023 = vxpose.xlu0.c.b16.cont [2/8] 0, 128
      %2024 = vxpose.xlu0.c.b16.cont [3/8] 0, 128
      %2025 = vxpose.xlu0.c.b16.cont [4/8] 0, 128
      %2026 = vxpose.xlu0.c.b16.cont [5/8] 0, 128
      %2027 = vxpose.xlu0.c.b16.cont [6/8] 0, 128
      %2028 = vxpose.xlu0.c.b16.cont [7/8] 0, 128
      %2029 = vxpose.xlu0.c.b16.end [8/8] 0, 128
      %v2030 = vpop.trf.xlu0
      %v2031 = vpop.trf.xlu0
      %v2032 = vpop.trf.xlu0
      %v2033 = vpop.trf.xlu0
      %v2034 = vpop.trf.xlu0
      %v2035 = vpop.trf.xlu0
      %v2036 = vpop.trf.xlu0
      %v2037 = vpop.trf.xlu0
      %v2039 = vsel %vm1314, %v2030, 0
      %2041 = vmatprep.subr.bf16.mxu0 0
      %2042 = vmatpush1.bf16.msra.mxu0 %v1959
      %2043 = vmatprep.subr.bf16.mxu0 0
      %2044 = vmatpush1.bf16.msra.mxu0 0
      %2045 = vmatprep.subr.bf16.mxu0 0
      %2046 = vmatpush1.bf16.msra.mxu0 0
      %2047 = vmatprep.subr.bf16.mxu0 0
      %2048 = vmatpush1.bf16.msra.mxu0 0
      %2049 = vmatprep.subr.bf16.mxu0 0
      %2050 = vmatpush1.bf16.msra.mxu0 0
      %2051 = vmatprep.subr.bf16.mxu0 0
      %2052 = vmatpush1.bf16.msra.mxu0 0
      %2053 = vmatprep.subr.bf16.mxu0 0
      %2054 = vmatpush1.bf16.msra.mxu0 0
      %2055 = vmatprep.subr.bf16.mxu0 0
      %2056 = vmatpush1.bf16.msra.mxu0 0
      %2057 = vmatprep.subr.bf16.mxu0 0
      %2058 = vmatpush1.bf16.msra.mxu0 0
      %2059 = vmatprep.subr.bf16.mxu0 0
      %2060 = vmatpush1.bf16.msra.mxu0 0
      %2061 = vmatprep.subr.bf16.mxu0 0
      %2062 = vmatpush1.bf16.msra.mxu0 0
      %2063 = vmatprep.subr.bf16.mxu0 0
      %2064 = vmatpush1.bf16.msra.mxu0 0
      %2065 = vmatprep.subr.bf16.mxu0 0
      %2066 = vmatpush1.bf16.msra.mxu0 0
      %2067 = vmatprep.subr.bf16.mxu0 0
      %2068 = vmatpush1.bf16.msra.mxu0 0
      %2069 = vmatprep.subr.bf16.mxu0 0
      %2070 = vmatpush1.bf16.msra.mxu0 0
      %2071 = vmatprep.subr.bf16.mxu0 0
      %2072 = vmatpush1.bf16.msra.mxu0 0
      %2073 = vmatprep.mubr.bf16.mxu0 0
      %2074 = vmatmul.mubr.bf16.gmra.mrb[0].mxu0 %v2039
      %v2075 = vpop.f32.mrb[0].mxu0
      %v2076 = vadd.f32 0.0, %v2075
      %v2077 = vpop.f32.mrb[0].mxu0
      %v2078 = vpop.f32.mrb[0].mxu0
      %v2079 = vadd.f32 0.0, %v2078
      %v2080 = vpop.f32.mrb[0].mxu0
      %2081 = vdwg.mxu0
      %2082 = vxpose.xlu0.c.b16.start [1/8] %v1956, 128
      %2083 = vxpose.xlu0.c.b16.cont [2/8] 0, 128
      %2084 = vxpose.xlu0.c.b16.cont [3/8] 0, 128
      %2085 = vxpose.xlu0.c.b16.cont [4/8] 0, 128
      %2086 = vxpose.xlu0.c.b16.cont [5/8] 0, 128
      %2087 = vxpose.xlu0.c.b16.cont [6/8] 0, 128
      %2088 = vxpose.xlu0.c.b16.cont [7/8] 0, 128
      %2089 = vxpose.xlu0.c.b16.end [8/8] 0, 128
      %v2090 = vpop.trf.xlu0
      %v2091 = vpop.trf.xlu0
      %v2092 = vpop.trf.xlu0
      %v2093 = vpop.trf.xlu0
      %v2094 = vpop.trf.xlu0
      %v2095 = vpop.trf.xlu0
      %v2096 = vpop.trf.xlu0
      %v2097 = vpop.trf.xlu0
      %v2099 = vsel %vm1314, %v2090, 0
      %2101 = vmatprep.subr.bf16.mxu0 0
      %2102 = vmatpush1.bf16.msra.mxu0 %v1960
      %2103 = vmatprep.subr.bf16.mxu0 0
      %2104 = vmatpush1.bf16.msra.mxu0 0
      %2105 = vmatprep.subr.bf16.mxu0 0
      %2106 = vmatpush1.bf16.msra.mxu0 0
      %2107 = vmatprep.subr.bf16.mxu0 0
      %2108 = vmatpush1.bf16.msra.mxu0 0
      %2109 = vmatprep.subr.bf16.mxu0 0
      %2110 = vmatpush1.bf16.msra.mxu0 0
      %2111 = vmatprep.subr.bf16.mxu0 0
      %2112 = vmatpush1.bf16.msra.mxu0 0
      %2113 = vmatprep.subr.bf16.mxu0 0
      %2114 = vmatpush1.bf16.msra.mxu0 0
      %2115 = vmatprep.subr.bf16.mxu0 0
      %2116 = vmatpush1.bf16.msra.mxu0 0
      %2117 = vmatprep.subr.bf16.mxu0 0
      %2118 = vmatpush1.bf16.msra.mxu0 0
      %2119 = vmatprep.subr.bf16.mxu0 0
      %2120 = vmatpush1.bf16.msra.mxu0 0
      %2121 = vmatprep.subr.bf16.mxu0 0
      %2122 = vmatpush1.bf16.msra.mxu0 0
      %2123 = vmatprep.subr.bf16.mxu0 0
      %2124 = vmatpush1.bf16.msra.mxu0 0
      %2125 = vmatprep.subr.bf16.mxu0 0
      %2126 = vmatpush1.bf16.msra.mxu0 0
      %2127 = vmatprep.subr.bf16.mxu0 0
      %2128 = vmatpush1.bf16.msra.mxu0 0
      %2129 = vmatprep.subr.bf16.mxu0 0
      %2130 = vmatpush1.bf16.msra.mxu0 0
      %2131 = vmatprep.subr.bf16.mxu0 0
      %2132 = vmatpush1.bf16.msra.mxu0 0
      %2133 = vmatprep.mubr.bf16.mxu0 0
      %2134 = vmatmul.mubr.bf16.gmra.mrb[0].mxu0 %v2099
      %v2135 = vpop.f32.mrb[0].mxu0
      %v2136 = vadd.f32 0.0, %v2135
      %v2137 = vpop.f32.mrb[0].mxu0
      %v2138 = vpop.f32.mrb[0].mxu0
      %v2139 = vadd.f32 0.0, %v2138
      %v2140 = vpop.f32.mrb[0].mxu0
      %2141 = vdwg.mxu0
      %2142 = vxpose.xlu0.c.b16.start [1/8] %v1957, 128
      %2143 = vxpose.xlu0.c.b16.cont [2/8] 0, 128
      %2144 = vxpose.xlu0.c.b16.cont [3/8] 0, 128
      %2145 = vxpose.xlu0.c.b16.cont [4/8] 0, 128
      %2146 = vxpose.xlu0.c.b16.cont [5/8] 0, 128
      %2147 = vxpose.xlu0.c.b16.cont [6/8] 0, 128
      %2148 = vxpose.xlu0.c.b16.cont [7/8] 0, 128
      %2149 = vxpose.xlu0.c.b16.end [8/8] 0, 128
      %v2150 = vpop.trf.xlu0
      %v2151 = vpop.trf.xlu0
      %v2152 = vpop.trf.xlu0
      %v2153 = vpop.trf.xlu0
      %v2154 = vpop.trf.xlu0
      %v2155 = vpop.trf.xlu0
      %v2156 = vpop.trf.xlu0
      %v2157 = vpop.trf.xlu0
      %v2159 = vsel %vm1314, %v2150, 0
      %2161 = vmatprep.subr.bf16.mxu0 0
      %2162 = vmatpush1.bf16.msra.mxu0 %v1961
      %2163 = vmatprep.subr.bf16.mxu0 0
      %2164 = vmatpush1.bf16.msra.mxu0 0
      %2165 = vmatprep.subr.bf16.mxu0 0
      %2166 = vmatpush1.bf16.msra.mxu0 0
      %2167 = vmatprep.subr.bf16.mxu0 0
      %2168 = vmatpush1.bf16.msra.mxu0 0
      %2169 = vmatprep.subr.bf16.mxu0 0
      %2170 = vmatpush1.bf16.msra.mxu0 0
      %2171 = vmatprep.subr.bf16.mxu0 0
      %2172 = vmatpush1.bf16.msra.mxu0 0
      %2173 = vmatprep.subr.bf16.mxu0 0
      %2174 = vmatpush1.bf16.msra.mxu0 0
      %2175 = vmatprep.subr.bf16.mxu0 0
      %2176 = vmatpush1.bf16.msra.mxu0 0
      %2177 = vmatprep.subr.bf16.mxu0 0
      %2178 = vmatpush1.bf16.msra.mxu0 0
      %2179 = vmatprep.subr.bf16.mxu0 0
      %2180 = vmatpush1.bf16.msra.mxu0 0
      %2181 = vmatprep.subr.bf16.mxu0 0
      %2182 = vmatpush1.bf16.msra.mxu0 0
      %2183 = vmatprep.subr.bf16.mxu0 0
      %2184 = vmatpush1.bf16.msra.mxu0 0
      %2185 = vmatprep.subr.bf16.mxu0 0
      %2186 = vmatpush1.bf16.msra.mxu0 0
      %2187 = vmatprep.subr.bf16.mxu0 0
      %2188 = vmatpush1.bf16.msra.mxu0 0
      %2189 = vmatprep.subr.bf16.mxu0 0
      %2190 = vmatpush1.bf16.msra.mxu0 0
      %2191 = vmatprep.subr.bf16.mxu0 0
      %2192 = vmatpush1.bf16.msra.mxu0 0
      %2193 = vmatprep.mubr.bf16.mxu0 0
      %2194 = vmatmul.mubr.bf16.gmra.mrb[0].mxu0 %v2159
      %v2195 = vpop.f32.mrb[0].mxu0
      %v2196 = vadd.f32 0.0, %v2195
      %v2197 = vpop.f32.mrb[0].mxu0
      %v2198 = vpop.f32.mrb[0].mxu0
      %v2199 = vadd.f32 0.0, %v2198
      %v2200 = vpop.f32.mrb[0].mxu0
      %2201 = vdwg.mxu0
      %v2202 = vlaneseq
      %v2203 = vshrl.u32 %v2202, 7
      %v2204 = vsub.s32 0, %v2203
      %v2205 = vrot.slane %v440, %v2204
      %v2206 = vmul.f32 %v1816, %v2205
      %v2207 = vmul.f32 %v1819, %v2205
      %v2208 = vmul.f32 %v1860, %v2205
      %v2209 = vmul.f32 %v1863, %v2205
      %v2210 = vmul.f32 %v1904, %v2205
      %v2211 = vmul.f32 %v1907, %v2205
      %v2212 = vmul.f32 %v1948, %v2205
      %v2213 = vmul.f32 %v1951, %v2205
      %v2214 = vadd.f32 %v442, %v2206
      %v2215 = vadd.f32 %v443, %v2207
      %v2216 = vadd.f32 %v444, %v2208
      %v2217 = vadd.f32 %v445, %v2209
      %v2218 = vadd.f32 %v446, %v2210
      %v2219 = vadd.f32 %v447, %v2211
      %v2220 = vadd.f32 %v448, %v2212
      %v2221 = vadd.f32 %v449, %v2213
      %2222 = vst.msk [vmem:[%s422] sm:$0xff] %vm1559, %v2214
      %2223 = vst.msk [vmem:[%s422 + $0x8] sm:$0xff] %vm1559, %v2215
      %2224 = vst.msk [vmem:[%s422 + $0x10] sm:$0xff] %vm1559, %v2216
      %2225 = vst.msk [vmem:[%s422 + $0x18] sm:$0xff] %vm1559, %v2217
      %2226 = vst.msk [vmem:[%s422 + $0x20] sm:$0xff] %vm1559, %v2218
      %2227 = vst.msk [vmem:[%s422 + $0x28] sm:$0xff] %vm1559, %v2219
      %2228 = vst.msk [vmem:[%s422 + $0x30] sm:$0xff] %vm1559, %v2220
      %2229 = vst.msk [vmem:[%s422 + $0x38] sm:$0xff] %vm1559, %v2221
      %v2230 = vlaneseq
      %v2231 = vshrl.u32 %v2230, 7
      %v2232 = vsub.s32 0, %v2231
      %v2233 = vrot.slane %v441, %v2232
      %v2234 = vmul.f32 %v2016, %v2233
      %v2235 = vmul.f32 %v2019, %v2233
      %v2236 = vmul.f32 %v2076, %v2233
      %v2237 = vmul.f32 %v2079, %v2233
      %v2238 = vmul.f32 %v2136, %v2233
      %v2239 = vmul.f32 %v2139, %v2233
      %v2240 = vmul.f32 %v2196, %v2233
      %v2241 = vmul.f32 %v2199, %v2233
      %v2242 = vadd.f32 %v450, %v2234
      %v2243 = vadd.f32 %v451, %v2235
      %v2244 = vadd.f32 %v452, %v2236
      %v2245 = vadd.f32 %v453, %v2237
      %v2246 = vadd.f32 %v454, %v2238
      %v2247 = vadd.f32 %v455, %v2239
      %v2248 = vadd.f32 %v456, %v2240
      %v2249 = vadd.f32 %v457, %v2241
      %2250 = vst.msk [vmem:[%s429] sm:$0xff] %vm1559, %v2242
      %2251 = vst.msk [vmem:[%s429 + $0x8] sm:$0xff] %vm1559, %v2243
      %2252 = vst.msk [vmem:[%s429 + $0x10] sm:$0xff] %vm1559, %v2244
      %2253 = vst.msk [vmem:[%s429 + $0x18] sm:$0xff] %vm1559, %v2245
      %2254 = vst.msk [vmem:[%s429 + $0x20] sm:$0xff] %vm1559, %v2246
      %2255 = vst.msk [vmem:[%s429 + $0x28] sm:$0xff] %vm1559, %v2247
      %2256 = vst.msk [vmem:[%s429 + $0x30] sm:$0xff] %vm1559, %v2248
      %2257 = vst.msk [vmem:[%s429 + $0x38] sm:$0xff] %vm1559, %v2249
      %s2258 = smul.u32 4, %s22
      %p2259 = scmp.lt.s32.totalorder %s2258, 15
      %s2260 = scalar_select %p2259, %s2258, 15
      %s2261 = smul.addr %s2260, 2
      %s2262 = smul.addr %s2261, 8
      %s2263 = scalar_lea.vmem %s9, %s2262
      %s2264 = smul.u32 4, %s22
      %p2265 = scmp.lt.s32.totalorder %s2264, 15
      %s2266 = scalar_select %p2265, %s2264, 15
      %s2267 = smul.addr %s2266, 2
      %s2268 = smul.addr %s2267, 8
      %s2269 = scalar_lea.vmem %s10, %s2268
      // Predicated region
      $region57: #{hfcim_forward.1} parent=55 // pred_check
        %p2270 = pneg %p244
      $region58: #{hfcim_forward.1} parent=55 // pred_check_branch
        %2272 = sbr.rel (%p2270) target = $region60
      $region59: #{hfcim_forward.1} parent=55 // pred_region
        %s2273 = smul.u32 4, %s22
      $region60: #{hfcim_forward.1} parent=55 // pred_fallthru
        _
      // Predicated region
      $region61: #{hfcim_forward.1} parent=55 // pred_check
        %p2274 = pneg %p270
      $region62: #{hfcim_forward.1} parent=55 // pred_check_branch
        %2276 = sbr.rel (%p2274) target = $region64
      $region63: #{hfcim_forward.1} parent=55 // pred_region
        %s2277 = smul.u32 4, %s22
      $region64: #{hfcim_forward.1} parent=55 // pred_fallthru
        _
    $region56: #{hfcim_forward.1} parent=5 // pred_fallthru
      _
    %p2278 = scmp.le.s32.totalorder 2, %s17
    // Predicated region
    $region65: #{hfcim_forward.1} parent=5 // pred_check
      %p2279 = pneg %p2278
    $region66: #{hfcim_forward.1} parent=5 // pred_check_branch
      %2281 = sbr.rel (%p2279) target = $region68
    $region67: #{hfcim_forward.1} parent=5 // pred_region
      %s2282 = ssub.s32 %s17, 2
      // Predicated region
      $region69: #{hfcim_forward.1} parent=67 // pred_check
        %p2283 = pneg %p250
      $region70: #{hfcim_forward.1} parent=67 // pred_check_branch
        %2285 = sbr.rel (%p2283) target = $region72
      $region71: #{hfcim_forward.1} parent=67 // pred_region
        %s2286 = smul.u32 4, %s23
        %p2287 = scmp.lt.s32.totalorder %s2286, 15
        %s2288 = scalar_select %p2287, %s2286, 15
        %s2289 = smul.addr %s2288, 2
        %s2290 = smul.addr %s2289, 8
        %s2291 = scalar_lea.vmem %s9, %s2290
      $region72: #{hfcim_forward.1} parent=67 // pred_fallthru
        _
      // Predicated region
      $region73: #{hfcim_forward.1} parent=67 // pred_check
        %p2292 = pneg %p276
      $region74: #{hfcim_forward.1} parent=67 // pred_check_branch
        %2294 = sbr.rel (%p2292) target = $region76
      $region75: #{hfcim_forward.1} parent=67 // pred_region
        %s2295 = smul.u32 4, %s23
        %p2296 = scmp.lt.s32.totalorder %s2295, 15
        %s2297 = scalar_select %p2296, %s2295, 15
        %s2298 = smul.addr %s2297, 2
        %s2299 = smul.addr %s2298, 8
        %s2300 = scalar_lea.vmem %s10, %s2299
      $region76: #{hfcim_forward.1} parent=67 // pred_fallthru
        _
    $region68: #{hfcim_forward.1} parent=5 // pred_fallthru
      _
  $region6: #{hfcim_forward.1} parent=0 // loop_footer
    %s21 = sadd.s32 1, %s17
  $region7: #{hfcim_forward.1} parent=0 // loop_footer_branch
    %16 = sbr.rel target = $region3
  $region8: #{hfcim_forward.1} parent=0 // loop_exit
    _

</llo_original>
